<compile_context>
chip_gen: v6e
topology: v6e:2x2x1
jax: 0.10.0
libtpu: 0.0.40
codegen_flags: <defaults>
</compile_context>

<pallas_src>
import functools

import jax
import jax.numpy as jnp
from jax.experimental import pallas as pl
from jax.experimental.pallas import tpu as pltpu


# ---------------------------------------------------------------------------
# Helpers
# ---------------------------------------------------------------------------
_VMEM_LIMIT_BYTES = 32 * 1024 * 1024   # valid on v5e / v6e / v7x
_VMEM_BUDGET_BYTES = 20 * 1024 * 1024  # headroom under the scoped limit


def _round_up(x, m):
    return (x + m - 1) // m * m


def _pick_tile_m(m, k, n_pad):
    """Largest M tile whose double-buffered footprint fits the VMEM budget."""
    tm = 16
    for cand in (2048, 1024, 512, 256, 128, 64, 32, 16):
        # 2x bf16 LHS tile + 2x f32 out tile (double buffered) + resident bf16
        # weights + scale/shift rows.
        need = 2 * cand * k * 2 + 2 * cand * n_pad * 4 + k * n_pad * 2 + 4 * n_pad * 4
        if need <= _VMEM_BUDGET_BYTES:
            tm = cand
            break
    return min(tm, _round_up(m, 16))


# ---------------------------------------------------------------------------
# Pallas kernel 1: M-tiled fused GEMM  (patches @ W) * scale + shift (+ ReLU)
#   bias is pre-folded into `shift`, BN(eval) folded into scale/shift.
# ---------------------------------------------------------------------------
def _fused_gemm_kernel(p_ref, w_ref, scale_ref, shift_ref, o_ref, *, apply_act):
    acc = jnp.dot(p_ref[...], w_ref[...], preferred_element_type=jnp.float32)
    y = acc * scale_ref[...] + shift_ref[...]
    if apply_act:
        y = jnp.maximum(y, 0.0)
    o_ref[...] = y.astype(o_ref.dtype)


def fused_gemm(patches, w, scale, shift, *, apply_act):
    """patches: (M, K), w: (K, N), scale/shift: (1, N) f32 -> (M, N) f32."""
    m, k = patches.shape
    n = w.shape[1]
    n_pad = _round_up(max(n, 128), 128)          # lane-dense output stores
    tm = _pick_tile_m(m, k, n_pad)
    m_pad = _round_up(m, tm)

    p = jnp.pad(patches.astype(jnp.bfloat16), ((0, m_pad - m), (0, 0)))
    wp = jnp.pad(w.astype(jnp.bfloat16), ((0, 0), (0, n_pad - n)))
    sc = jnp.pad(scale.astype(jnp.float32), ((0, 0), (0, n_pad - n)))
    sh = jnp.pad(shift.astype(jnp.float32), ((0, 0), (0, n_pad - n)))

    out = pl.pallas_call(
        functools.partial(_fused_gemm_kernel, apply_act=apply_act),
        out_shape=jax.ShapeDtypeStruct((m_pad, n_pad), jnp.float32),
        grid=(m_pad // tm,),
        in_specs=[
            pl.BlockSpec((tm, k), lambda i: (i, 0)),       # pipelined LHS tiles
            pl.BlockSpec((k, n_pad), lambda i: (0, 0)),    # resident weights
            pl.BlockSpec((1, n_pad), lambda i: (0, 0)),
            pl.BlockSpec((1, n_pad), lambda i: (0, 0)),
        ],
        out_specs=pl.BlockSpec((tm, n_pad), lambda i: (i, 0)),
        compiler_params=pltpu.CompilerParams(
            dimension_semantics=("parallel",),             # shard M tiles on v7x 2xTC
            vmem_limit_bytes=_VMEM_LIMIT_BYTES),
    )(p, wp, sc, sh)
    return out[:m, :n]


# ---------------------------------------------------------------------------
# Pallas kernel 2: fused fc head  (fc1 k=spatial -> ReLU -> fc2 1x1 -> ReLU -> out 1x1)
# ---------------------------------------------------------------------------
def _head_kernel(x_ref, w1_ref, b1_ref, w2_ref, b2_ref, w3_ref, b3_ref, o_ref):
    h = jnp.dot(x_ref[...], w1_ref[...], preferred_element_type=jnp.float32) + b1_ref[...]
    h = jnp.maximum(h, 0.0)
    h = jnp.dot(h.astype(jnp.bfloat16), w2_ref[...],
                preferred_element_type=jnp.float32) + b2_ref[...]
    h = jnp.maximum(h, 0.0)
    o = jnp.dot(h.astype(jnp.bfloat16), w3_ref[...],
                preferred_element_type=jnp.float32) + b3_ref[...]
    o_ref[...] = o.astype(o_ref.dtype)


def fused_head(xf, w1, b1, w2, b2, w3, b3):
    """xf: (B, K1); w1: (K1,N1), w2: (N1,N2), w3: (N2,N3); returns (B, N3) f32."""
    m, k1 = xf.shape
    n1, n2, n3 = w1.shape[1], w2.shape[1], w3.shape[1]
    n1p = _round_up(max(n1, 128), 128)
    n2p = _round_up(max(n2, 128), 128)
    n3p = _round_up(max(n3, 128), 128)
    m_pad = _round_up(m, 16)

    xp = jnp.pad(xf.astype(jnp.bfloat16), ((0, m_pad - m), (0, 0)))
    w1p = jnp.pad(w1.astype(jnp.bfloat16), ((0, 0), (0, n1p - n1)))
    b1p = jnp.pad(b1.reshape(1, -1).astype(jnp.float32), ((0, 0), (0, n1p - n1)))
    w2p = jnp.pad(w2.astype(jnp.bfloat16), ((0, n1p - n1), (0, n2p - n2)))
    b2p = jnp.pad(b2.reshape(1, -1).astype(jnp.float32), ((0, 0), (0, n2p - n2)))
    w3p = jnp.pad(w3.astype(jnp.bfloat16), ((0, n2p - n2), (0, n3p - n3)))
    b3p = jnp.pad(b3.reshape(1, -1).astype(jnp.float32), ((0, 0), (0, n3p - n3)))

    out = pl.pallas_call(
        _head_kernel,
        out_shape=jax.ShapeDtypeStruct((m_pad, n3p), jnp.float32),
        grid=(1,),
        in_specs=[
            pl.BlockSpec((m_pad, k1), lambda i: (0, 0)),
            pl.BlockSpec((k1, n1p), lambda i: (0, 0)),
            pl.BlockSpec((1, n1p), lambda i: (0, 0)),
            pl.BlockSpec((n1p, n2p), lambda i: (0, 0)),
            pl.BlockSpec((1, n2p), lambda i: (0, 0)),
            pl.BlockSpec((n2p, n3p), lambda i: (0, 0)),
            pl.BlockSpec((1, n3p), lambda i: (0, 0)),
        ],
        out_specs=pl.BlockSpec((m_pad, n3p), lambda i: (0, 0)),
        compiler_params=pltpu.CompilerParams(
            dimension_semantics=("arbitrary",),
            vmem_limit_bytes=_VMEM_LIMIT_BYTES),
    )(xp, w1p, b1p, w2p, b2p, w3p, b3p)
    return out[:m, :n3]


# ---------------------------------------------------------------------------
# Conv3d = channels-last im2col (XLA glue) + fused Pallas GEMM
# ---------------------------------------------------------------------------
def _im2col_ndhwc(x, k, stride, padding):
    """x: (N, D, H, W, C) -> (N*Do*Ho*Wo, k^3*C) patches (tap-major, C fastest)."""
    n, d, h, w, c = x.shape
    xp = jnp.pad(x, ((0, 0), (padding, padding), (padding, padding),
                     (padding, padding), (0, 0)))
    dp, hp, wp = d + 2 * padding, h + 2 * padding, w + 2 * padding
    do = (dp - k) // stride + 1
    ho = (hp - k) // stride + 1
    wo = (wp - k) // stride + 1
    cols = []
    for kd in range(k):
        for kh in range(k):
            for kw in range(k):
                cols.append(xp[:, kd:kd + stride * do:stride,
                               kh:kh + stride * ho:stride,
                               kw:kw + stride * wo:stride, :])
    patches = jnp.stack(cols, axis=4)                       # (N,Do,Ho,Wo,k^3,C)
    patches = patches.reshape(n * do * ho * wo, k * k * k * c)
    return patches, (n, do, ho, wo)


def _bn_affine(bn, bias, cout):
    """Fold eval-BatchNorm (eps=1e-5) and the conv bias into a single affine."""
    if bn is None:
        scale = jnp.ones((cout,), jnp.float32)
        shift = jnp.zeros((cout,), jnp.float32)
    else:
        gamma, beta, mean, var = bn
        scale = gamma * jax.lax.rsqrt(var + 1e-5)
        shift = beta - mean * scale
    shift = shift + bias.astype(jnp.float32) * scale        # (acc+b)*s+t == acc*s + (b*s+t)
    return scale[None, :], shift[None, :]


def conv3d_ndhwc(x, w, b, *, stride, padding, bn=None, act=True):
    """PyTorch-style Conv3d (+ optional eval BN + ReLU). x: NDHWC, w: (Cout,Cin,k,k,k)."""
    cout, cin, k = w.shape[0], w.shape[1], w.shape[2]
    scale, shift = _bn_affine(bn, b, cout)
    xb = x.astype(jnp.bfloat16)
    if k == 1 and stride == 1 and padding == 0:              # 1x1x1 conv: plain GEMM
        n, d, h, wd, _ = x.shape
        patches = xb.reshape(n * d * h * wd, cin)
        dims = (n, d, h, wd)
        w2 = w.reshape(cout, cin).T
    else:
        patches, dims = _im2col_ndhwc(xb, k, stride, padding)
        w2 = w.transpose(2, 3, 4, 1, 0).reshape(k * k * k * cin, cout)
    y = fused_gemm(patches, w2, scale, shift, apply_act=act)
    n, do, ho, wo = dims
    return y.reshape(n, do, ho, wo, cout)


# ---------------------------------------------------------------------------
# ConvBlock5d (reconstructed) and FeatUNet forward
# ---------------------------------------------------------------------------
def conv_block_5d(x, params, *, stride, padding):
    (w1, b1, bn1), (w2, b2, bn2) = params
    x = conv3d_ndhwc(x, w1, b1, stride=stride, padding=padding, bn=bn1, act=True)
    x = conv3d_ndhwc(x, w2, b2, stride=1, padding=padding, bn=bn2, act=True)
    return x


def feat_unet_forward(x_ncdhw, params, cfg):
    # channels-last for the whole network; convert once here and once at the end
    x = jnp.transpose(x_ncdhw, (0, 2, 3, 4, 1))
    # downsampling path (torch.utils.checkpoint is identity for forward math)
    for n in range(cfg["n_layers"]):
        x = conv_block_5d(x, params["ds"][n],
                          stride=cfg["conv_strides"][n],
                          padding=cfg["padding_list"][n])
    # bottleneck block (stride 1)
    x = conv_block_5d(x, params["bg"], stride=1,
                      padding=cfg["padding_list"][cfg["n_layers"]])

    ss = cfg["spatial_size"]
    w1, b1 = params["fc1"]
    w2, b2 = params["fc2"]
    w3, b3 = params["out"]
    nb, d, h, wd, c = x.shape
    if (d, h, wd) == (ss, ss, ss):
        # fused head: one Pallas kernel for fc1 -> ReLU -> fc2 -> ReLU -> out
        xf = x.reshape(nb, ss * ss * ss * c)
        w1m = w1.transpose(2, 3, 4, 1, 0).reshape(ss * ss * ss * c, w1.shape[0])
        w2m = w2.reshape(w2.shape[0], w2.shape[1]).T
        w3m = w3.reshape(w3.shape[0], w3.shape[1]).T
        y = fused_head(xf, w1m, b1, w2m, b2, w3m, b3)
        y = y.reshape(nb, 1, 1, 1, w3.shape[0])
    else:
        # general fallback if the spatial extent differs from spatial_size
        y = conv3d_ndhwc(x, w1, b1, stride=1, padding=0, bn=None, act=True)
        y = conv3d_ndhwc(y, w2, b2, stride=1, padding=0, bn=None, act=True)
        y = conv3d_ndhwc(y, w3, b3, stride=1, padding=0, bn=None, act=False)
    return jnp.transpose(y, (0, 4, 1, 2, 3))                 # back to NCDHW


# ---------------------------------------------------------------------------
# Deterministic parameter construction (PyTorch layouts)
# ---------------------------------------------------------------------------
def _init_conv(key, cout, cin, k):
    kw, kb = jax.random.split(key)
    fan_in = float(cin * k * k * k)
    w = jax.random.normal(kw, (cout, cin, k, k, k), jnp.float32) * (fan_in ** -0.5)
    b = 0.01 * jax.random.normal(kb, (cout,), jnp.float32)
    return w, b


def _init_bn(key, c):
    k1, k2, k3 = jax.random.split(key, 3)
    gamma = 1.0 + 0.1 * jax.random.normal(k1, (c,), jnp.float32)
    beta = 0.05 * jax.random.normal(k2, (c,), jnp.float32)
    mean = 0.05 * jax.random.normal(k3, (c,), jnp.float32)
    var = jnp.ones((c,), jnp.float32)
    return gamma, beta, mean, var


def _init_block(key, in_ch, base_ch, end_ch, k):
    k1, k2, k3, k4 = jax.random.split(key, 4)
    w1, b1 = _init_conv(k1, base_ch, in_ch, k)
    bn1 = _init_bn(k2, base_ch)
    w2, b2 = _init_conv(k3, end_ch, base_ch, k)
    bn2 = _init_bn(k4, end_ch)
    return ((w1, b1, bn1), (w2, b2, bn2))


def build_params(key, cfg):
    keys = jax.random.split(key, cfg["n_layers"] + 5)
    params = {"ds": []}
    for n in range(cfg["n_layers"]):
        params["ds"].append(_init_block(keys[n], cfg["in_ch_list"][n],
                                        cfg["base_ch_list"][n], cfg["end_ch_list"][n],
                                        cfg["kernel_sizes"][n]))
    nl = cfg["n_layers"]
    params["bg"] = _init_block(keys[nl], cfg["in_ch_list"][nl],
                               cfg["base_ch_list"][nl], cfg["end_ch_list"][nl],
                               cfg["kernel_sizes"][nl])
    params["fc1"] = _init_conv(keys[nl + 1], cfg["end_ch_list"][nl],
                               cfg["end_ch_list"][nl], cfg["spatial_size"])
    params["fc2"] = _init_conv(keys[nl + 2], cfg["fv_dim"], cfg["end_ch_list"][nl], 1)
    params["out"] = _init_conv(keys[nl + 3], cfg["out_ch"], cfg["fv_dim"], 1)
    return params


# ---------------------------------------------------------------------------
if __name__ == "__main__":
    cfg = dict(
        n_layers=2,
        in_ch_list=[1, 8, 16],
        base_ch_list=[8, 16, 32],
        end_ch_list=[8, 16, 32],
        padding_list=[1, 1, 1],
        kernel_sizes=[3, 3, 3],
        conv_strides=[2, 2],
        checkpoint_layers=[False, False, False],
        out_ch=4,
        fv_dim=16,
        spatial_size=2,   # spatial extent after the two stride-2 blocks: 8 -> 4 -> 2
        dropout=0.0,
    )

    key = jax.random.PRNGKey(0)
    k_x, k_p = jax.random.split(key)
    x = jax.random.normal(k_x, (2, 1, 8, 8, 8), jnp.float32)   # NCDHW
    params = build_params(k_p, cfg)

    fwd = jax.jit(lambda xx, pp: feat_unet_forward(xx, pp, cfg))
    y = fwd(x, params)
    jax.block_until_ready(y)
    assert y.shape == (2, cfg["out_ch"], 1, 1, 1), y.shape
    print("KERNEL_OK")
</pallas_src>

<mosaic_0001>
module attributes {stable_mosaic.version = 11 : i64} {
  func.func @_fused_gemm_kernel(%arg0: i32, %arg1: memref<128x27xbf16, #tpu.memory_space<vmem>>, %arg2: memref<27x128xbf16, #tpu.memory_space<vmem>>, %arg3: memref<1x128xf32, #tpu.memory_space<vmem>>, %arg4: memref<1x128xf32, #tpu.memory_space<vmem>>, %arg5: memref<128x128xf32, #tpu.memory_space<vmem>>) attributes {dimension_semantics = [#tpu.dimension_semantics<parallel>], iteration_bounds = array<i64: 1>, scalar_prefetch = 0 : i64, scratch_operands = 0 : i64, tpu.core_type = #tpu.core_type<tc>, window_params = [{transform_indices = @transform_0, window_bounds = array<i64: 128, 27>}, {pipeline_mode = #tpu.pipeline_mode<synchronous>, transform_indices = @transform_1, window_bounds = array<i64: 27, 128>}, {pipeline_mode = #tpu.pipeline_mode<synchronous>, transform_indices = @transform_2, window_bounds = array<i64: 1, 128>}, {pipeline_mode = #tpu.pipeline_mode<synchronous>, transform_indices = @transform_3, window_bounds = array<i64: 1, 128>}, {transform_indices = @transform_4, window_bounds = array<i64: 128, 128>}]} {
    %c0 = arith.constant 0 : index
    %c0_0 = arith.constant 0 : index
    %0 = vector.load %arg1[%c0, %c0_0] : memref<128x27xbf16, #tpu.memory_space<vmem>>, vector<128x27xbf16>
    %c0_1 = arith.constant 0 : index
    %c0_2 = arith.constant 0 : index
    %1 = vector.load %arg2[%c0_1, %c0_2] : memref<27x128xbf16, #tpu.memory_space<vmem>>, vector<27x128xbf16>
    %cst = arith.constant dense<0.000000e+00> : vector<128x128xf32>
    %2 = tpu.matmul %0, %1, %cst {dimension_numbers = #tpu.dot_dimension_numbers<[1], [0], [0], [1], [0, 0, 1, 1], [], []>} : vector<128x27xbf16>, vector<27x128xbf16>, vector<128x128xf32> -> vector<128x128xf32>
    %c0_3 = arith.constant 0 : index
    %c0_4 = arith.constant 0 : index
    %3 = vector.load %arg3[%c0_3, %c0_4] : memref<1x128xf32, #tpu.memory_space<vmem>>, vector<1x128xf32>
    %4 = vector.broadcast %3 : vector<1x128xf32> to vector<128x128xf32>
    %5 = arith.mulf %2, %4 : vector<128x128xf32>
    %c0_5 = arith.constant 0 : index
    %c0_6 = arith.constant 0 : index
    %6 = vector.load %arg4[%c0_5, %c0_6] : memref<1x128xf32, #tpu.memory_space<vmem>>, vector<1x128xf32>
    %7 = vector.broadcast %6 : vector<1x128xf32> to vector<128x128xf32>
    %8 = arith.addf %5, %7 : vector<128x128xf32>
    %cst_7 = arith.constant 0.000000e+00 : f32
    %9 = vector.broadcast %cst_7 : f32 to vector<128x128xf32>
    %10 = arith.maximumf %8, %9 : vector<128x128xf32>
    %c0_8 = arith.constant 0 : index
    %c0_9 = arith.constant 0 : index
    %11 = vector.load %arg5[%c0_8, %c0_9] : memref<128x128xf32, #tpu.memory_space<vmem>>, vector<128x128xf32>
    tpu.vector_store %arg5[%c0_8, %c0_9], %10 {strides = array<i32>} : memref<128x128xf32, #tpu.memory_space<vmem>>, vector<128x128xf32>,
    return
  }
  func.func @transform_0(%arg0: i32) -> (i32, i32) {
    %c0_i32 = arith.constant 0 : i32
    %c0_i32_0 = arith.constant 0 : i32
    return %arg0, %c0_i32 : i32, i32
  }
  func.func @transform_1(%arg0: i32) -> (i32, i32) {
    %c0_i32 = arith.constant 0 : i32
    %c0_i32_0 = arith.constant 0 : i32
    %c0_i32_1 = arith.constant 0 : i32
    return %c0_i32, %c0_i32_0 : i32, i32
  }
  func.func @transform_2(%arg0: i32) -> (i32, i32) {
    %c0_i32 = arith.constant 0 : i32
    %c0_i32_0 = arith.constant 0 : i32
    %c0_i32_1 = arith.constant 0 : i32
    return %c0_i32, %c0_i32_0 : i32, i32
  }
  func.func @transform_3(%arg0: i32) -> (i32, i32) {
    %c0_i32 = arith.constant 0 : i32
    %c0_i32_0 = arith.constant 0 : i32
    %c0_i32_1 = arith.constant 0 : i32
    return %c0_i32, %c0_i32_0 : i32, i32
  }
  func.func @transform_4(%arg0: i32) -> (i32, i32) {
    %c0_i32 = arith.constant 0 : i32
    %c0_i32_0 = arith.constant 0 : i32
    return %arg0, %c0_i32 : i32, i32
  }
}

module attributes {stable_mosaic.version = 11 : i64} {
  func.func @_fused_gemm_kernel(%arg0: i32, %arg1: memref<128x216xbf16, #tpu.memory_space<vmem>>, %arg2: memref<216x128xbf16, #tpu.memory_space<vmem>>, %arg3: memref<1x128xf32, #tpu.memory_space<vmem>>, %arg4: memref<1x128xf32, #tpu.memory_space<vmem>>, %arg5: memref<128x128xf32, #tpu.memory_space<vmem>>) attributes {dimension_semantics = [#tpu.dimension_semantics<parallel>], iteration_bounds = array<i64: 1>, scalar_prefetch = 0 : i64, scratch_operands = 0 : i64, tpu.core_type = #tpu.core_type<tc>, window_params = [{transform_indices = @transform_0, window_bounds = array<i64: 128, 216>}, {pipeline_mode = #tpu.pipeline_mode<synchronous>, transform_indices = @transform_1, window_bounds = array<i64: 216, 128>}, {pipeline_mode = #tpu.pipeline_mode<synchronous>, transform_indices = @transform_2, window_bounds = array<i64: 1, 128>}, {pipeline_mode = #tpu.pipeline_mode<synchronous>, transform_indices = @transform_3, window_bounds = array<i64: 1, 128>}, {transform_indices = @transform_4, window_bounds = array<i64: 128, 128>}]} {
    %c0 = arith.constant 0 : index
    %c0_0 = arith.constant 0 : index
    %0 = vector.load %arg1[%c0, %c0_0] : memref<128x216xbf16, #tpu.memory_space<vmem>>, vector<128x216xbf16>
    %c0_1 = arith.constant 0 : index
    %c0_2 = arith.constant 0 : index
    %1 = vector.load %arg2[%c0_1, %c0_2] : memref<216x128xbf16, #tpu.memory_space<vmem>>, vector<216x128xbf16>
    %cst = arith.constant dense<0.000000e+00> : vector<128x128xf32>
    %2 = tpu.matmul %0, %1, %cst {dimension_numbers = #tpu.dot_dimension_numbers<[1], [0], [0], [1], [0, 0, 1, 1], [], []>} : vector<128x216xbf16>, vector<216x128xbf16>, vector<128x128xf32> -> vector<128x128xf32>
    %c0_3 = arith.constant 0 : index
    %c0_4 = arith.constant 0 : index
    %3 = vector.load %arg3[%c0_3, %c0_4] : memref<1x128xf32, #tpu.memory_space<vmem>>, vector<1x128xf32>
    %4 = vector.broadcast %3 : vector<1x128xf32> to vector<128x128xf32>
    %5 = arith.mulf %2, %4 : vector<128x128xf32>
    %c0_5 = arith.constant 0 : index
    %c0_6 = arith.constant 0 : index
    %6 = vector.load %arg4[%c0_5, %c0_6] : memref<1x128xf32, #tpu.memory_space<vmem>>, vector<1x128xf32>
    %7 = vector.broadcast %6 : vector<1x128xf32> to vector<128x128xf32>
    %8 = arith.addf %5, %7 : vector<128x128xf32>
    %cst_7 = arith.constant 0.000000e+00 : f32
    %9 = vector.broadcast %cst_7 : f32 to vector<128x128xf32>
    %10 = arith.maximumf %8, %9 : vector<128x128xf32>
    %c0_8 = arith.constant 0 : index
    %c0_9 = arith.constant 0 : index
    %11 = vector.load %arg5[%c0_8, %c0_9] : memref<128x128xf32, #tpu.memory_space<vmem>>, vector<128x128xf32>
    tpu.vector_store %arg5[%c0_8, %c0_9], %10 {strides = array<i32>} : memref<128x128xf32, #tpu.memory_space<vmem>>, vector<128x128xf32>,
    return
  }
  func.func @transform_0(%arg0: i32) -> (i32, i32) {
    %c0_i32 = arith.constant 0 : i32
    %c0_i32_0 = arith.constant 0 : i32
    return %arg0, %c0_i32 : i32, i32
  }
  func.func @transform_1(%arg0: i32) -> (i32, i32) {
    %c0_i32 = arith.constant 0 : i32
    %c0_i32_0 = arith.constant 0 : i32
    %c0_i32_1 = arith.constant 0 : i32
    return %c0_i32, %c0_i32_0 : i32, i32
  }
  func.func @transform_2(%arg0: i32) -> (i32, i32) {
    %c0_i32 = arith.constant 0 : i32
    %c0_i32_0 = arith.constant 0 : i32
    %c0_i32_1 = arith.constant 0 : i32
    return %c0_i32, %c0_i32_0 : i32, i32
  }
  func.func @transform_3(%arg0: i32) -> (i32, i32) {
    %c0_i32 = arith.constant 0 : i32
    %c0_i32_0 = arith.constant 0 : i32
    %c0_i32_1 = arith.constant 0 : i32
    return %c0_i32, %c0_i32_0 : i32, i32
  }
  func.func @transform_4(%arg0: i32) -> (i32, i32) {
    %c0_i32 = arith.constant 0 : i32
    %c0_i32_0 = arith.constant 0 : i32
    return %arg0, %c0_i32 : i32, i32
  }
}

module attributes {stable_mosaic.version = 11 : i64} {
  func.func @_fused_gemm_kernel(%arg0: i32, %arg1: memref<16x216xbf16, #tpu.memory_space<vmem>>, %arg2: memref<216x128xbf16, #tpu.memory_space<vmem>>, %arg3: memref<1x128xf32, #tpu.memory_space<vmem>>, %arg4: memref<1x128xf32, #tpu.memory_space<vmem>>, %arg5: memref<16x128xf32, #tpu.memory_space<vmem>>) attributes {dimension_semantics = [#tpu.dimension_semantics<parallel>], iteration_bounds = array<i64: 1>, scalar_prefetch = 0 : i64, scratch_operands = 0 : i64, tpu.core_type = #tpu.core_type<tc>, window_params = [{transform_indices = @transform_0, window_bounds = array<i64: 16, 216>}, {pipeline_mode = #tpu.pipeline_mode<synchronous>, transform_indices = @transform_1, window_bounds = array<i64: 216, 128>}, {pipeline_mode = #tpu.pipeline_mode<synchronous>, transform_indices = @transform_2, window_bounds = array<i64: 1, 128>}, {pipeline_mode = #tpu.pipeline_mode<synchronous>, transform_indices = @transform_3, window_bounds = array<i64: 1, 128>}, {transform_indices = @transform_4, window_bounds = array<i64: 16, 128>}]} {
    %c0 = arith.constant 0 : index
    %c0_0 = arith.constant 0 : index
    %0 = vector.load %arg1[%c0, %c0_0] : memref<16x216xbf16, #tpu.memory_space<vmem>>, vector<16x216xbf16>
    %c0_1 = arith.constant 0 : index
    %c0_2 = arith.constant 0 : index
    %1 = vector.load %arg2[%c0_1, %c0_2] : memref<216x128xbf16, #tpu.memory_space<vmem>>, vector<216x128xbf16>
    %cst = arith.constant dense<0.000000e+00> : vector<16x128xf32>
    %2 = tpu.matmul %0, %1, %cst {dimension_numbers = #tpu.dot_dimension_numbers<[1], [0], [0], [1], [0, 0, 1, 1], [], []>} : vector<16x216xbf16>, vector<216x128xbf16>, vector<16x128xf32> -> vector<16x128xf32>
    %c0_3 = arith.constant 0 : index
    %c0_4 = arith.constant 0 : index
    %3 = vector.load %arg3[%c0_3, %c0_4] : memref<1x128xf32, #tpu.memory_space<vmem>>, vector<1x128xf32>
    %4 = vector.broadcast %3 : vector<1x128xf32> to vector<16x128xf32>
    %5 = arith.mulf %2, %4 : vector<16x128xf32>
    %c0_5 = arith.constant 0 : index
    %c0_6 = arith.constant 0 : index
    %6 = vector.load %arg4[%c0_5, %c0_6] : memref<1x128xf32, #tpu.memory_space<vmem>>, vector<1x128xf32>
    %7 = vector.broadcast %6 : vector<1x128xf32> to vector<16x128xf32>
    %8 = arith.addf %5, %7 : vector<16x128xf32>
    %cst_7 = arith.constant 0.000000e+00 : f32
    %9 = vector.broadcast %cst_7 : f32 to vector<16x128xf32>
    %10 = arith.maximumf %8, %9 : vector<16x128xf32>
    %c0_8 = arith.constant 0 : index
    %c0_9 = arith.constant 0 : index
    %11 = vector.load %arg5[%c0_8, %c0_9] : memref<16x128xf32, #tpu.memory_space<vmem>>, vector<16x128xf32>
    tpu.vector_store %arg5[%c0_8, %c0_9], %10 {strides = array<i32>} : memref<16x128xf32, #tpu.memory_space<vmem>>, vector<16x128xf32>,
    return
  }
  func.func @transform_0(%arg0: i32) -> (i32, i32) {
    %c0_i32 = arith.constant 0 : i32
    %c0_i32_0 = arith.constant 0 : i32
    return %arg0, %c0_i32 : i32, i32
  }
  func.func @transform_1(%arg0: i32) -> (i32, i32) {
    %c0_i32 = arith.constant 0 : i32
    %c0_i32_0 = arith.constant 0 : i32
    %c0_i32_1 = arith.constant 0 : i32
    return %c0_i32, %c0_i32_0 : i32, i32
  }
  func.func @transform_2(%arg0: i32) -> (i32, i32) {
    %c0_i32 = arith.constant 0 : i32
    %c0_i32_0 = arith.constant 0 : i32
    %c0_i32_1 = arith.constant 0 : i32
    return %c0_i32, %c0_i32_0 : i32, i32
  }
  func.func @transform_3(%arg0: i32) -> (i32, i32) {
    %c0_i32 = arith.constant 0 : i32
    %c0_i32_0 = arith.constant 0 : i32
    %c0_i32_1 = arith.constant 0 : i32
    return %c0_i32, %c0_i32_0 : i32, i32
  }
  func.func @transform_4(%arg0: i32) -> (i32, i32) {
    %c0_i32 = arith.constant 0 : i32
    %c0_i32_0 = arith.constant 0 : i32
    return %arg0, %c0_i32 : i32, i32
  }
}

module attributes {stable_mosaic.version = 11 : i64} {
  func.func @_fused_gemm_kernel(%arg0: i32, %arg1: memref<16x432xbf16, #tpu.memory_space<vmem>>, %arg2: memref<432x128xbf16, #tpu.memory_space<vmem>>, %arg3: memref<1x128xf32, #tpu.memory_space<vmem>>, %arg4: memref<1x128xf32, #tpu.memory_space<vmem>>, %arg5: memref<16x128xf32, #tpu.memory_space<vmem>>) attributes {dimension_semantics = [#tpu.dimension_semantics<parallel>], iteration_bounds = array<i64: 1>, scalar_prefetch = 0 : i64, scratch_operands = 0 : i64, tpu.core_type = #tpu.core_type<tc>, window_params = [{transform_indices = @transform_0, window_bounds = array<i64: 16, 432>}, {pipeline_mode = #tpu.pipeline_mode<synchronous>, transform_indices = @transform_1, window_bounds = array<i64: 432, 128>}, {pipeline_mode = #tpu.pipeline_mode<synchronous>, transform_indices = @transform_2, window_bounds = array<i64: 1, 128>}, {pipeline_mode = #tpu.pipeline_mode<synchronous>, transform_indices = @transform_3, window_bounds = array<i64: 1, 128>}, {transform_indices = @transform_4, window_bounds = array<i64: 16, 128>}]} {
    %c0 = arith.constant 0 : index
    %c0_0 = arith.constant 0 : index
    %0 = vector.load %arg1[%c0, %c0_0] : memref<16x432xbf16, #tpu.memory_space<vmem>>, vector<16x432xbf16>
    %c0_1 = arith.constant 0 : index
    %c0_2 = arith.constant 0 : index
    %1 = vector.load %arg2[%c0_1, %c0_2] : memref<432x128xbf16, #tpu.memory_space<vmem>>, vector<432x128xbf16>
    %cst = arith.constant dense<0.000000e+00> : vector<16x128xf32>
    %2 = tpu.matmul %0, %1, %cst {dimension_numbers = #tpu.dot_dimension_numbers<[1], [0], [0], [1], [0, 0, 1, 1], [], []>} : vector<16x432xbf16>, vector<432x128xbf16>, vector<16x128xf32> -> vector<16x128xf32>
    %c0_3 = arith.constant 0 : index
    %c0_4 = arith.constant 0 : index
    %3 = vector.load %arg3[%c0_3, %c0_4] : memref<1x128xf32, #tpu.memory_space<vmem>>, vector<1x128xf32>
    %4 = vector.broadcast %3 : vector<1x128xf32> to vector<16x128xf32>
    %5 = arith.mulf %2, %4 : vector<16x128xf32>
    %c0_5 = arith.constant 0 : index
    %c0_6 = arith.constant 0 : index
    %6 = vector.load %arg4[%c0_5, %c0_6] : memref<1x128xf32, #tpu.memory_space<vmem>>, vector<1x128xf32>
    %7 = vector.broadcast %6 : vector<1x128xf32> to vector<16x128xf32>
    %8 = arith.addf %5, %7 : vector<16x128xf32>
    %cst_7 = arith.constant 0.000000e+00 : f32
    %9 = vector.broadcast %cst_7 : f32 to vector<16x128xf32>
    %10 = arith.maximumf %8, %9 : vector<16x128xf32>
    %c0_8 = arith.constant 0 : index
    %c0_9 = arith.constant 0 : index
    %11 = vector.load %arg5[%c0_8, %c0_9] : memref<16x128xf32, #tpu.memory_space<vmem>>, vector<16x128xf32>
    tpu.vector_store %arg5[%c0_8, %c0_9], %10 {strides = array<i32>} : memref<16x128xf32, #tpu.memory_space<vmem>>, vector<16x128xf32>,
    return
  }
  func.func @transform_0(%arg0: i32) -> (i32, i32) {
    %c0_i32 = arith.constant 0 : i32
    %c0_i32_0 = arith.constant 0 : i32
    return %arg0, %c0_i32 : i32, i32
  }
  func.func @transform_1(%arg0: i32) -> (i32, i32) {
    %c0_i32 = arith.constant 0 : i32
    %c0_i32_0 = arith.constant 0 : i32
    %c0_i32_1 = arith.constant 0 : i32
    return %c0_i32, %c0_i32_0 : i32, i32
  }
  func.func @transform_2(%arg0: i32) -> (i32, i32) {
    %c0_i32 = arith.constant 0 : i32
    %c0_i32_0 = arith.constant 0 : i32
    %c0_i32_1 = arith.constant 0 : i32
    return %c0_i32, %c0_i32_0 : i32, i32
  }
  func.func @transform_3(%arg0: i32) -> (i32, i32) {
    %c0_i32 = arith.constant 0 : i32
    %c0_i32_0 = arith.constant 0 : i32
    %c0_i32_1 = arith.constant 0 : i32
    return %c0_i32, %c0_i32_0 : i32, i32
  }
  func.func @transform_4(%arg0: i32) -> (i32, i32) {
    %c0_i32 = arith.constant 0 : i32
    %c0_i32_0 = arith.constant 0 : i32
    return %arg0, %c0_i32 : i32, i32
  }
}

module attributes {stable_mosaic.version = 11 : i64} {
  func.func @_fused_gemm_kernel(%arg0: i32, %arg1: memref<16x864xbf16, #tpu.memory_space<vmem>>, %arg2: memref<864x128xbf16, #tpu.memory_space<vmem>>, %arg3: memref<1x128xf32, #tpu.memory_space<vmem>>, %arg4: memref<1x128xf32, #tpu.memory_space<vmem>>, %arg5: memref<16x128xf32, #tpu.memory_space<vmem>>) attributes {dimension_semantics = [#tpu.dimension_semantics<parallel>], iteration_bounds = array<i64: 1>, scalar_prefetch = 0 : i64, scratch_operands = 0 : i64, tpu.core_type = #tpu.core_type<tc>, window_params = [{transform_indices = @transform_0, window_bounds = array<i64: 16, 864>}, {pipeline_mode = #tpu.pipeline_mode<synchronous>, transform_indices = @transform_1, window_bounds = array<i64: 864, 128>}, {pipeline_mode = #tpu.pipeline_mode<synchronous>, transform_indices = @transform_2, window_bounds = array<i64: 1, 128>}, {pipeline_mode = #tpu.pipeline_mode<synchronous>, transform_indices = @transform_3, window_bounds = array<i64: 1, 128>}, {transform_indices = @transform_4, window_bounds = array<i64: 16, 128>}]} {
    %c0 = arith.constant 0 : index
    %c0_0 = arith.constant 0 : index
    %0 = vector.load %arg1[%c0, %c0_0] : memref<16x864xbf16, #tpu.memory_space<vmem>>, vector<16x864xbf16>
    %c0_1 = arith.constant 0 : index
    %c0_2 = arith.constant 0 : index
    %1 = vector.load %arg2[%c0_1, %c0_2] : memref<864x128xbf16, #tpu.memory_space<vmem>>, vector<864x128xbf16>
    %cst = arith.constant dense<0.000000e+00> : vector<16x128xf32>
    %2 = tpu.matmul %0, %1, %cst {dimension_numbers = #tpu.dot_dimension_numbers<[1], [0], [0], [1], [0, 0, 1, 1], [], []>} : vector<16x864xbf16>, vector<864x128xbf16>, vector<16x128xf32> -> vector<16x128xf32>
    %c0_3 = arith.constant 0 : index
    %c0_4 = arith.constant 0 : index
    %3 = vector.load %arg3[%c0_3, %c0_4] : memref<1x128xf32, #tpu.memory_space<vmem>>, vector<1x128xf32>
    %4 = vector.broadcast %3 : vector<1x128xf32> to vector<16x128xf32>
    %5 = arith.mulf %2, %4 : vector<16x128xf32>
    %c0_5 = arith.constant 0 : index
    %c0_6 = arith.constant 0 : index
    %6 = vector.load %arg4[%c0_5, %c0_6] : memref<1x128xf32, #tpu.memory_space<vmem>>, vector<1x128xf32>
    %7 = vector.broadcast %6 : vector<1x128xf32> to vector<16x128xf32>
    %8 = arith.addf %5, %7 : vector<16x128xf32>
    %cst_7 = arith.constant 0.000000e+00 : f32
    %9 = vector.broadcast %cst_7 : f32 to vector<16x128xf32>
    %10 = arith.maximumf %8, %9 : vector<16x128xf32>
    %c0_8 = arith.constant 0 : index
    %c0_9 = arith.constant 0 : index
    %11 = vector.load %arg5[%c0_8, %c0_9] : memref<16x128xf32, #tpu.memory_space<vmem>>, vector<16x128xf32>
    tpu.vector_store %arg5[%c0_8, %c0_9], %10 {strides = array<i32>} : memref<16x128xf32, #tpu.memory_space<vmem>>, vector<16x128xf32>,
    return
  }
  func.func @transform_0(%arg0: i32) -> (i32, i32) {
    %c0_i32 = arith.constant 0 : i32
    %c0_i32_0 = arith.constant 0 : i32
    return %arg0, %c0_i32 : i32, i32
  }
  func.func @transform_1(%arg0: i32) -> (i32, i32) {
    %c0_i32 = arith.constant 0 : i32
    %c0_i32_0 = arith.constant 0 : i32
    %c0_i32_1 = arith.constant 0 : i32
    return %c0_i32, %c0_i32_0 : i32, i32
  }
  func.func @transform_2(%arg0: i32) -> (i32, i32) {
    %c0_i32 = arith.constant 0 : i32
    %c0_i32_0 = arith.constant 0 : i32
    %c0_i32_1 = arith.constant 0 : i32
    return %c0_i32, %c0_i32_0 : i32, i32
  }
  func.func @transform_3(%arg0: i32) -> (i32, i32) {
    %c0_i32 = arith.constant 0 : i32
    %c0_i32_0 = arith.constant 0 : i32
    %c0_i32_1 = arith.constant 0 : i32
    return %c0_i32, %c0_i32_0 : i32, i32
  }
  func.func @transform_4(%arg0: i32) -> (i32, i32) {
    %c0_i32 = arith.constant 0 : i32
    %c0_i32_0 = arith.constant 0 : i32
    return %arg0, %c0_i32 : i32, i32
  }
}

module attributes {stable_mosaic.version = 11 : i64} {
  func.func @_head_kernel(%arg0: i32, %arg1: memref<16x256xbf16, #tpu.memory_space<vmem>>, %arg2: memref<256x128xbf16, #tpu.memory_space<vmem>>, %arg3: memref<1x128xf32, #tpu.memory_space<vmem>>, %arg4: memref<128x128xbf16, #tpu.memory_space<vmem>>, %arg5: memref<1x128xf32, #tpu.memory_space<vmem>>, %arg6: memref<128x128xbf16, #tpu.memory_space<vmem>>, %arg7: memref<1x128xf32, #tpu.memory_space<vmem>>, %arg8: memref<16x128xf32, #tpu.memory_space<vmem>>) attributes {dimension_semantics = [#tpu.dimension_semantics<arbitrary>], iteration_bounds = array<i64: 1>, scalar_prefetch = 0 : i64, scratch_operands = 0 : i64, tpu.core_type = #tpu.core_type<tc>, window_params = [{pipeline_mode = #tpu.pipeline_mode<synchronous>, transform_indices = @transform_0, window_bounds = array<i64: 16, 256>}, {pipeline_mode = #tpu.pipeline_mode<synchronous>, transform_indices = @transform_1, window_bounds = array<i64: 256, 128>}, {pipeline_mode = #tpu.pipeline_mode<synchronous>, transform_indices = @transform_2, window_bounds = array<i64: 1, 128>}, {pipeline_mode = #tpu.pipeline_mode<synchronous>, transform_indices = @transform_3, window_bounds = array<i64: 128, 128>}, {pipeline_mode = #tpu.pipeline_mode<synchronous>, transform_indices = @transform_4, window_bounds = array<i64: 1, 128>}, {pipeline_mode = #tpu.pipeline_mode<synchronous>, transform_indices = @transform_5, window_bounds = array<i64: 128, 128>}, {pipeline_mode = #tpu.pipeline_mode<synchronous>, transform_indices = @transform_6, window_bounds = array<i64: 1, 128>}, {pipeline_mode = #tpu.pipeline_mode<synchronous>, transform_indices = @transform_7, window_bounds = array<i64: 16, 128>}]} {
    %c0 = arith.constant 0 : index
    %c0_0 = arith.constant 0 : index
    %0 = vector.load %arg1[%c0, %c0_0] : memref<16x256xbf16, #tpu.memory_space<vmem>>, vector<16x256xbf16>
    %c0_1 = arith.constant 0 : index
    %c0_2 = arith.constant 0 : index
    %1 = vector.load %arg2[%c0_1, %c0_2] : memref<256x128xbf16, #tpu.memory_space<vmem>>, vector<256x128xbf16>
    %cst = arith.constant dense<0.000000e+00> : vector<16x128xf32>
    %2 = tpu.matmul %0, %1, %cst {dimension_numbers = #tpu.dot_dimension_numbers<[1], [0], [0], [1], [0, 0, 1, 1], [], []>} : vector<16x256xbf16>, vector<256x128xbf16>, vector<16x128xf32> -> vector<16x128xf32>
    %c0_3 = arith.constant 0 : index
    %c0_4 = arith.constant 0 : index
    %3 = vector.load %arg3[%c0_3, %c0_4] : memref<1x128xf32, #tpu.memory_space<vmem>>, vector<1x128xf32>
    %4 = vector.broadcast %3 : vector<1x128xf32> to vector<16x128xf32>
    %5 = arith.addf %2, %4 : vector<16x128xf32>
    %cst_5 = arith.constant 0.000000e+00 : f32
    %6 = vector.broadcast %cst_5 : f32 to vector<16x128xf32>
    %7 = arith.maximumf %5, %6 : vector<16x128xf32>
    %8 = arith.truncf %7 : vector<16x128xf32> to vector<16x128xbf16>
    %c0_6 = arith.constant 0 : index
    %c0_7 = arith.constant 0 : index
    %9 = vector.load %arg4[%c0_6, %c0_7] : memref<128x128xbf16, #tpu.memory_space<vmem>>, vector<128x128xbf16>
    %cst_8 = arith.constant dense<0.000000e+00> : vector<16x128xf32>
    %10 = tpu.matmul %8, %9, %cst_8 {dimension_numbers = #tpu.dot_dimension_numbers<[1], [0], [0], [1], [0, 0, 1, 1], [], []>} : vector<16x128xbf16>, vector<128x128xbf16>, vector<16x128xf32> -> vector<16x128xf32>
    %c0_9 = arith.constant 0 : index
    %c0_10 = arith.constant 0 : index
    %11 = vector.load %arg5[%c0_9, %c0_10] : memref<1x128xf32, #tpu.memory_space<vmem>>, vector<1x128xf32>
    %12 = vector.broadcast %11 : vector<1x128xf32> to vector<16x128xf32>
    %13 = arith.addf %10, %12 : vector<16x128xf32>
    %cst_11 = arith.constant 0.000000e+00 : f32
    %14 = vector.broadcast %cst_11 : f32 to vector<16x128xf32>
    %15 = arith.maximumf %13, %14 : vector<16x128xf32>
    %16 = arith.truncf %15 : vector<16x128xf32> to vector<16x128xbf16>
    %c0_12 = arith.constant 0 : index
    %c0_13 = arith.constant 0 : index
    %17 = vector.load %arg6[%c0_12, %c0_13] : memref<128x128xbf16, #tpu.memory_space<vmem>>, vector<128x128xbf16>
    %cst_14 = arith.constant dense<0.000000e+00> : vector<16x128xf32>
    %18 = tpu.matmul %16, %17, %cst_14 {dimension_numbers = #tpu.dot_dimension_numbers<[1], [0], [0], [1], [0, 0, 1, 1], [], []>} : vector<16x128xbf16>, vector<128x128xbf16>, vector<16x128xf32> -> vector<16x128xf32>
    %c0_15 = arith.constant 0 : index
    %c0_16 = arith.constant 0 : index
    %19 = vector.load %arg7[%c0_15, %c0_16] : memref<1x128xf32, #tpu.memory_space<vmem>>, vector<1x128xf32>
    %20 = vector.broadcast %19 : vector<1x128xf32> to vector<16x128xf32>
    %21 = arith.addf %18, %20 : vector<16x128xf32>
    %c0_17 = arith.constant 0 : index
    %c0_18 = arith.constant 0 : index
    %22 = vector.load %arg8[%c0_17, %c0_18] : memref<16x128xf32, #tpu.memory_space<vmem>>, vector<16x128xf32>
    tpu.vector_store %arg8[%c0_17, %c0_18], %21 {strides = array<i32>} : memref<16x128xf32, #tpu.memory_space<vmem>>, vector<16x128xf32>,
    return
  }
  func.func @transform_0(%arg0: i32) -> (i32, i32) {
    %c0_i32 = arith.constant 0 : i32
    %c0_i32_0 = arith.constant 0 : i32
    %c0_i32_1 = arith.constant 0 : i32
    return %c0_i32, %c0_i32_0 : i32, i32
  }
  func.func @transform_1(%arg0: i32) -> (i32, i32) {
    %c0_i32 = arith.constant 0 : i32
    %c0_i32_0 = arith.constant 0 : i32
    %c0_i32_1 = arith.constant 0 : i32
    return %c0_i32, %c0_i32_0 : i32, i32
  }
  func.func @transform_2(%arg0: i32) -> (i32, i32) {
    %c0_i32 = arith.constant 0 : i32
    %c0_i32_0 = arith.constant 0 : i32
    %c0_i32_1 = arith.constant 0 : i32
    return %c0_i32, %c0_i32_0 : i32, i32
  }
  func.func @transform_3(%arg0: i32) -> (i32, i32) {
    %c0_i32 = arith.constant 0 : i32
    %c0_i32_0 = arith.constant 0 : i32
    %c0_i32_1 = arith.constant 0 : i32
    return %c0_i32, %c0_i32_0 : i32, i32
  }
  func.func @transform_4(%arg0: i32) -> (i32, i32) {
    %c0_i32 = arith.constant 0 : i32
    %c0_i32_0 = arith.constant 0 : i32
    %c0_i32_1 = arith.constant 0 : i32
    return %c0_i32, %c0_i32_0 : i32, i32
  }
  func.func @transform_5(%arg0: i32) -> (i32, i32) {
    %c0_i32 = arith.constant 0 : i32
    %c0_i32_0 = arith.constant 0 : i32
    %c0_i32_1 = arith.constant 0 : i32
    return %c0_i32, %c0_i32_0 : i32, i32
  }
  func.func @transform_6(%arg0: i32) -> (i32, i32) {
    %c0_i32 = arith.constant 0 : i32
    %c0_i32_0 = arith.constant 0 : i32
    %c0_i32_1 = arith.constant 0 : i32
    return %c0_i32, %c0_i32_0 : i32, i32
  }
  func.func @transform_7(%arg0: i32) -> (i32, i32) {
    %c0_i32 = arith.constant 0 : i32
    %c0_i32_0 = arith.constant 0 : i32
    %c0_i32_1 = arith.constant 0 : i32
    return %c0_i32, %c0_i32_0 : i32, i32
  }
}

</mosaic_0001>

<llo_original>
// kernel: _lambda_.7
$region0: #{_lambda_.7}
  #allocation0 [shape = 'u32[]', space=smem, size = 0x4, offset = 0x4, fixed_abs, tag = 'smem constant byte address 0x4 - core index']
  #allocation1 [shape = 'u32[144,128]{1,0:T(1,128)}', space=vmem, size = 0x12000, scoped, tag = 'internal scratch']
  %s0 = inlined_call_operand.vmem [shape: bf16[128,27], index: 0, kind: input, shape index: {}]
  %s1 = inlined_call_operand.vmem [shape: bf16[27,128], index: 1, kind: input, shape index: {}]
  %s2 = inlined_call_operand.vmem [shape: f32[1,128], index: 2, kind: input, shape index: {}]
  %s3 = inlined_call_operand.vmem [shape: f32[1,128], index: 3, kind: input, shape index: {}]
  %s4 = inlined_call_operand.vmem [shape: f32[128,128], index: 4, kind: output, shape index: {}]
  %s5 = sld [smem:[#allocation0]]
  $region26: #{_lambda_.7} parent=0
    _
  %s7 = ssub.s32 1, %s5
  %s8 = scalar_select 0, %s7, %s5
  // Predicated region
  $region2: #{_lambda_.7} parent=0 // pred_check
    _
  $region3: #{_lambda_.7} parent=0 // pred_check_branch
    %10 = sbr.rel (0) target = $region5
  $region4: #{_lambda_.7} parent=0 // pred_region
    _
  $region5: #{_lambda_.7} parent=0 // pred_fallthru
    _
  // Predicated region
  $region6: #{_lambda_.7} parent=0 // pred_check
    _
  $region7: #{_lambda_.7} parent=0 // pred_check_branch
    %12 = sbr.rel (0) target = $region9
  $region8: #{_lambda_.7} parent=0 // pred_region
    _
  $region9: #{_lambda_.7} parent=0 // pred_fallthru
    _
  // Predicated region
  $region10: #{_lambda_.7} parent=0 // pred_check
    _
  $region11: #{_lambda_.7} parent=0 // pred_check_branch
    %14 = sbr.rel (0) target = $region13
  $region12: #{_lambda_.7} parent=0 // pred_region
    _
  $region13: #{_lambda_.7} parent=0 // pred_fallthru
    _
  // Predicated region
  $region14: #{_lambda_.7} parent=0 // pred_check
    _
  $region15: #{_lambda_.7} parent=0 // pred_check_branch
    %16 = sbr.rel (0) target = $region17
  $region16: #{_lambda_.7} parent=0 // pred_region
    _
  $region17: #{_lambda_.7} parent=0 // pred_fallthru
    _
  %v18 = vld [vmem:[%s0] sm:$0xf]
  %v19 = vld [vmem:[%s0 + $0x4] sm:$0xf]
  %v20 = vld [vmem:[%s0 + $0x8] sm:$0xf]
  %v21 = vld [vmem:[%s0 + $0xc] sm:$0xf]
  %v22 = vld [vmem:[%s0 + $0x10] sm:$0xf]
  %v23 = vld [vmem:[%s0 + $0x14] sm:$0xf]
  %v24 = vld [vmem:[%s0 + $0x18] sm:$0xf]
  %v25 = vld [vmem:[%s0 + $0x1c] sm:$0xf]
  %v26 = vld [vmem:[%s0 + $0x20] sm:$0xf]
  %v27 = vld [vmem:[%s0 + $0x24] sm:$0xf]
  %v28 = vld [vmem:[%s0 + $0x28] sm:$0xf]
  %v29 = vld [vmem:[%s0 + $0x2c] sm:$0xf]
  %v30 = vld [vmem:[%s0 + $0x30] sm:$0xf]
  %v31 = vld [vmem:[%s0 + $0x34] sm:$0xf]
  %v32 = vld [vmem:[%s0 + $0x38] sm:$0xf]
  %v33 = vld [vmem:[%s0 + $0x3c] sm:$0xf]
  %v34 = vld [vmem:[%s1] sm:$0xf]
  %v35 = vld [vmem:[%s1 + $0x4] sm:$0xf]
  %v36 = vld [vmem:[%s1 + $0x8] sm:$0xf]
  %v37 = vld [vmem:[%s1 + $0xc] sm:$0x3]
  %v54 = vunpack.c.l.b16 %v18
  %v55 = vunpack.c.l.b16 %v19
  %v56 = vunpack.c.l.b16 %v20
  %v57 = vunpack.c.l.b16 %v21
  %v58 = vunpack.c.l.b16 %v22
  %v59 = vunpack.c.l.b16 %v23
  %v60 = vunpack.c.l.b16 %v24
  %v61 = vunpack.c.l.b16 %v25
  %v62 = vunpack.c.l.b16 %v26
  %v63 = vunpack.c.l.b16 %v27
  %v64 = vunpack.c.l.b16 %v28
  %v65 = vunpack.c.l.b16 %v29
  %v66 = vunpack.c.l.b16 %v30
  %v67 = vunpack.c.l.b16 %v31
  %v68 = vunpack.c.l.b16 %v32
  %v69 = vunpack.c.l.b16 %v33
  %v70 = vpack.c.b16 %v55, %v54
  %v71 = vpack.c.b16 %v57, %v56
  %v72 = vpack.c.b16 %v59, %v58
  %v73 = vpack.c.b16 %v61, %v60
  %v74 = vpack.c.b16 %v63, %v62
  %v75 = vpack.c.b16 %v65, %v64
  %v76 = vpack.c.b16 %v67, %v66
  %v77 = vpack.c.b16 %v69, %v68
  %v82 = vunpack.c.l.b16 %v34
  %v83 = vunpack.c.l.b16 %v35
  %v84 = vunpack.c.l.b16 %v36
  %v85 = vunpack.c.l.b16 %v37
  %v86 = vpack.c.b16 %v83, %v82
  %v87 = vpack.c.b16 %v85, %v84
  %vm89 = vcmask 220160
  %v91 = vsel %vm89, %v70, 0
  %v94 = vsel %vm89, %v71, 0
  %v97 = vsel %vm89, %v72, 0
  %v100 = vsel %vm89, %v73, 0
  %v103 = vsel %vm89, %v74, 0
  %v106 = vsel %vm89, %v75, 0
  %v109 = vsel %vm89, %v76, 0
  %v112 = vsel %vm89, %v77, 0
  %vm114 = vcmask 1044480
  %vm115 = vcmask 1045504
  %v116 = vsel %vm114, 4294967295, 65535
  %v117 = vsel %vm115, %v116, 0
  %v119 = vand.u32 %v87, %v117
  %121 = vmatprep.subr.bf16.mxu0 0
  %122 = vmatpush1.bf16.msra.mxu0 0
  %123 = vmatprep.subr.bf16.mxu0 0
  %124 = vmatpush1.bf16.msra.mxu0 0
  %125 = vmatprep.subr.bf16.mxu0 0
  %126 = vmatpush1.bf16.msra.mxu0 0
  %127 = vmatprep.subr.bf16.mxu0 0
  %128 = vmatpush1.bf16.msra.mxu0 0
  %129 = vmatprep.subr.bf16.mxu0 0
  %130 = vmatpush1.bf16.msra.mxu0 0
  %131 = vmatprep.subr.bf16.mxu0 0
  %132 = vmatpush1.bf16.msra.mxu0 0
  %133 = vmatprep.subr.bf16.mxu0 0
  %134 = vmatpush1.bf16.msra.mxu0 %v119
  %135 = vmatprep.subr.bf16.mxu0 0
  %136 = vmatpush1.bf16.msra.mxu0 %v86
  %137 = vmatprep.subr.bf16.mxu0 0
  %138 = vmatpush2.bf16.msra.mxu0 0
  %139 = vmatprep.subr.bf16.mxu0 0
  %140 = vmatpush2.bf16.msra.mxu0 0
  %141 = vmatprep.subr.bf16.mxu0 0
  %142 = vmatpush2.bf16.msra.mxu0 0
  %143 = vmatprep.subr.bf16.mxu0 0
  %144 = vmatpush2.bf16.msra.mxu0 0
  %145 = vmatprep.subr.bf16.mxu0 0
  %146 = vmatpush2.bf16.msra.mxu0 0
  %147 = vmatprep.subr.bf16.mxu0 0
  %148 = vmatpush2.bf16.msra.mxu0 0
  %149 = vmatprep.subr.bf16.mxu0 0
  %150 = vmatpush2.bf16.msra.mxu0 0
  %151 = vmatprep.subr.bf16.mxu0 0
  %152 = vmatpush2.bf16.msra.mxu0 0
  %153 = vmatprep.mubr.bf16.mxu0 0
  %154 = vmatmul.mubr.bf16.gmra.mxu0 %v91
  %v155 = vpop.f32.mrf.mxu0
  %v156 = vadd.f32 0.0, %v155
  %v157 = vpop.f32.mrf.mxu0
  %v158 = vpop.f32.mrf.mxu0
  %v159 = vadd.f32 0.0, %v158
  %v160 = vpop.f32.mrf.mxu0
  %161 = vmatprep.mubr.bf16.mxu0 0
  %162 = vmatmul.mubr.bf16.gmra.mxu0 %v94
  %v163 = vpop.f32.mrf.mxu0
  %v164 = vadd.f32 0.0, %v163
  %v165 = vpop.f32.mrf.mxu0
  %v166 = vpop.f32.mrf.mxu0
  %v167 = vadd.f32 0.0, %v166
  %v168 = vpop.f32.mrf.mxu0
  %169 = vmatprep.mubr.bf16.mxu0 0
  %170 = vmatmul.mubr.bf16.gmra.mxu0 %v97
  %v171 = vpop.f32.mrf.mxu0
  %v172 = vadd.f32 0.0, %v171
  %v173 = vpop.f32.mrf.mxu0
  %v174 = vpop.f32.mrf.mxu0
  %v175 = vadd.f32 0.0, %v174
  %v176 = vpop.f32.mrf.mxu0
  %177 = vmatprep.mubr.bf16.mxu0 0
  %178 = vmatmul.mubr.bf16.gmra.mxu0 %v100
  %v179 = vpop.f32.mrf.mxu0
  %v180 = vadd.f32 0.0, %v179
  %v181 = vpop.f32.mrf.mxu0
  %v182 = vpop.f32.mrf.mxu0
  %v183 = vadd.f32 0.0, %v182
  %v184 = vpop.f32.mrf.mxu0
  %185 = vmatprep.mubr.bf16.mxu0 0
  %186 = vmatmul.mubr.bf16.gmra.mxu0 %v103
  %v187 = vpop.f32.mrf.mxu0
  %v188 = vadd.f32 0.0, %v187
  %v189 = vpop.f32.mrf.mxu0
  %v190 = vpop.f32.mrf.mxu0
  %v191 = vadd.f32 0.0, %v190
  %v192 = vpop.f32.mrf.mxu0
  %193 = vmatprep.mubr.bf16.mxu0 0
  %194 = vmatmul.mubr.bf16.gmra.mxu0 %v106
  %v195 = vpop.f32.mrf.mxu0
  %v196 = vadd.f32 0.0, %v195
  %v197 = vpop.f32.mrf.mxu0
  %v198 = vpop.f32.mrf.mxu0
  %v199 = vadd.f32 0.0, %v198
  %v200 = vpop.f32.mrf.mxu0
  %201 = vmatprep.mubr.bf16.mxu0 0
  %202 = vmatmul.mubr.bf16.gmra.mxu0 %v109
  %v203 = vpop.f32.mrf.mxu0
  %v204 = vadd.f32 0.0, %v203
  %v205 = vpop.f32.mrf.mxu0
  %v206 = vpop.f32.mrf.mxu0
  %v207 = vadd.f32 0.0, %v206
  %v208 = vpop.f32.mrf.mxu0
  %209 = vmatprep.mubr.bf16.mxu0 0
  %210 = vmatmul.mubr.bf16.gmra.mxu0 %v112
  %v211 = vpop.f32.mrf.mxu0
  %v212 = vadd.f32 0.0, %v211
  %v213 = vpop.f32.mrf.mxu0
  %v214 = vpop.f32.mrf.mxu0
  %v215 = vadd.f32 0.0, %v214
  %v216 = vpop.f32.mrf.mxu0
  %217 = vdwg.mxu0
  %v218 = vld [vmem:[%s2] sm:$0x1]
  %v220 = vlaneseq
  %v221 = vshrl.u32 %v220, 7
  %v222 = vsub.s32 0, %v221
  %v223 = vrot.slane %v218, %v222
  %v225 = vmul.f32 %v156, %v223
  %v226 = vmul.f32 %v159, %v223
  %v227 = vmul.f32 %v164, %v223
  %v228 = vmul.f32 %v167, %v223
  %v229 = vmul.f32 %v172, %v223
  %v230 = vmul.f32 %v175, %v223
  %v231 = vmul.f32 %v180, %v223
  %v232 = vmul.f32 %v183, %v223
  %v233 = vmul.f32 %v188, %v223
  %v234 = vmul.f32 %v191, %v223
  %v235 = vmul.f32 %v196, %v223
  %v236 = vmul.f32 %v199, %v223
  %v237 = vmul.f32 %v204, %v223
  %v238 = vmul.f32 %v207, %v223
  %v239 = vmul.f32 %v212, %v223
  %v240 = vmul.f32 %v215, %v223
  %v241 = vld [vmem:[%s3] sm:$0x1]
  %v243 = vlaneseq
  %v244 = vshrl.u32 %v243, 7
  %v245 = vsub.s32 0, %v244
  %v246 = vrot.slane %v241, %v245
  %v248 = vadd.f32 %v225, %v246
  %v249 = vadd.f32 %v226, %v246
  %v250 = vadd.f32 %v227, %v246
  %v251 = vadd.f32 %v228, %v246
  %v252 = vadd.f32 %v229, %v246
  %v253 = vadd.f32 %v230, %v246
  %v254 = vadd.f32 %v231, %v246
  %v255 = vadd.f32 %v232, %v246
  %v256 = vadd.f32 %v233, %v246
  %v257 = vadd.f32 %v234, %v246
  %v258 = vadd.f32 %v235, %v246
  %v259 = vadd.f32 %v236, %v246
  %v260 = vadd.f32 %v237, %v246
  %v261 = vadd.f32 %v238, %v246
  %v262 = vadd.f32 %v239, %v246
  %v263 = vadd.f32 %v240, %v246
  %v264 = vmax.f32 %v248, 0.0
  %v265 = vmax.f32 %v249, 0.0
  %v266 = vmax.f32 %v250, 0.0
  %v267 = vmax.f32 %v251, 0.0
  %v268 = vmax.f32 %v252, 0.0
  %v269 = vmax.f32 %v253, 0.0
  %v270 = vmax.f32 %v254, 0.0
  %v271 = vmax.f32 %v255, 0.0
  %v272 = vmax.f32 %v256, 0.0
  %v273 = vmax.f32 %v257, 0.0
  %v274 = vmax.f32 %v258, 0.0
  %v275 = vmax.f32 %v259, 0.0
  %v276 = vmax.f32 %v260, 0.0
  %v277 = vmax.f32 %v261, 0.0
  %v278 = vmax.f32 %v262, 0.0
  %v279 = vmax.f32 %v263, 0.0
  %280 = vst [vmem:[%s4] sm:$0xff] %v264
  %281 = vst [vmem:[%s4 + $0x8] sm:$0xff] %v265
  %282 = vst [vmem:[%s4 + $0x10] sm:$0xff] %v266
  %283 = vst [vmem:[%s4 + $0x18] sm:$0xff] %v267
  %284 = vst [vmem:[%s4 + $0x20] sm:$0xff] %v268
  %285 = vst [vmem:[%s4 + $0x28] sm:$0xff] %v269
  %286 = vst [vmem:[%s4 + $0x30] sm:$0xff] %v270
  %287 = vst [vmem:[%s4 + $0x38] sm:$0xff] %v271
  %288 = vst [vmem:[%s4 + $0x40] sm:$0xff] %v272
  %289 = vst [vmem:[%s4 + $0x48] sm:$0xff] %v273
  %290 = vst [vmem:[%s4 + $0x50] sm:$0xff] %v274
  %291 = vst [vmem:[%s4 + $0x58] sm:$0xff] %v275
  %292 = vst [vmem:[%s4 + $0x60] sm:$0xff] %v276
  %293 = vst [vmem:[%s4 + $0x68] sm:$0xff] %v277
  %294 = vst [vmem:[%s4 + $0x70] sm:$0xff] %v278
  %295 = vst [vmem:[%s4 + $0x78] sm:$0xff] %v279
  // Predicated region
  $region18: #{_lambda_.7} parent=0 // pred_check
    _
  $region19: #{_lambda_.7} parent=0 // pred_check_branch
    %297 = sbr.rel (0) target = $region21
  $region20: #{_lambda_.7} parent=0 // pred_region
    _
  $region21: #{_lambda_.7} parent=0 // pred_fallthru
    _
  // Predicated region
  $region22: #{_lambda_.7} parent=0 // pred_check
    _
  $region23: #{_lambda_.7} parent=0 // pred_check_branch
    %299 = sbr.rel (0) target = $region25
  $region24: #{_lambda_.7} parent=0 // pred_region
    _
  $region25: #{_lambda_.7} parent=0 // pred_fallthru
    _

// kernel: _lambda_.8
$region0: #{_lambda_.8}
  #allocation0 [shape = 'u32[]', space=smem, size = 0x4, offset = 0x4, fixed_abs, tag = 'smem constant byte address 0x4 - core index']
  #allocation1 [shape = 'u32[144,128]{1,0:T(1,128)}', space=vmem, size = 0x12000, scoped, tag = 'internal scratch']
  %s0 = inlined_call_operand.vmem [shape: bf16[128,216], index: 0, kind: input, shape index: {}]
  %s1 = inlined_call_operand.vmem [shape: bf16[216,128], index: 1, kind: input, shape index: {}]
  %s2 = inlined_call_operand.vmem [shape: f32[1,128], index: 2, kind: input, shape index: {}]
  %s3 = inlined_call_operand.vmem [shape: f32[1,128], index: 3, kind: input, shape index: {}]
  %s4 = inlined_call_operand.vmem [shape: f32[128,128], index: 4, kind: output, shape index: {}]
  %s5 = sld [smem:[#allocation0]]
  $region26: #{_lambda_.8} parent=0
    _
  %s7 = ssub.s32 1, %s5
  %s8 = scalar_select 0, %s7, %s5
  // Predicated region
  $region2: #{_lambda_.8} parent=0 // pred_check
    _
  $region3: #{_lambda_.8} parent=0 // pred_check_branch
    %10 = sbr.rel (0) target = $region5
  $region4: #{_lambda_.8} parent=0 // pred_region
    _
  $region5: #{_lambda_.8} parent=0 // pred_fallthru
    _
  // Predicated region
  $region6: #{_lambda_.8} parent=0 // pred_check
    _
  $region7: #{_lambda_.8} parent=0 // pred_check_branch
    %12 = sbr.rel (0) target = $region9
  $region8: #{_lambda_.8} parent=0 // pred_region
    _
  $region9: #{_lambda_.8} parent=0 // pred_fallthru
    _
  // Predicated region
  $region10: #{_lambda_.8} parent=0 // pred_check
    _
  $region11: #{_lambda_.8} parent=0 // pred_check_branch
    %14 = sbr.rel (0) target = $region13
  $region12: #{_lambda_.8} parent=0 // pred_region
    _
  $region13: #{_lambda_.8} parent=0 // pred_fallthru
    _
  // Predicated region
  $region14: #{_lambda_.8} parent=0 // pred_check
    _
  $region15: #{_lambda_.8} parent=0 // pred_check_branch
    %16 = sbr.rel (0) target = $region17
  $region16: #{_lambda_.8} parent=0 // pred_region
    _
  $region17: #{_lambda_.8} parent=0 // pred_fallthru
    _
  %v18 = vld [vmem:[%s0] sm:$0xff]
  %v19 = vld [vmem:[%s0 + $0x8] sm:$0xff]
  %v20 = vld [vmem:[%s0 + $0x10] sm:$0xff]
  %v21 = vld [vmem:[%s0 + $0x18] sm:$0xff]
  %v22 = vld [vmem:[%s0 + $0x20] sm:$0xff]
  %v23 = vld [vmem:[%s0 + $0x28] sm:$0xff]
  %v24 = vld [vmem:[%s0 + $0x30] sm:$0xff]
  %v25 = vld [vmem:[%s0 + $0x38] sm:$0xff]
  %v26 = vld [vmem:[%s0 + $0x40] sm:$0xff]
  %v27 = vld [vmem:[%s0 + $0x48] sm:$0xff]
  %v28 = vld [vmem:[%s0 + $0x50] sm:$0xff]
  %v29 = vld [vmem:[%s0 + $0x58] sm:$0xff]
  %v30 = vld [vmem:[%s0 + $0x60] sm:$0xff]
  %v31 = vld [vmem:[%s0 + $0x68] sm:$0xff]
  %v32 = vld [vmem:[%s0 + $0x70] sm:$0xff]
  %v33 = vld [vmem:[%s0 + $0x78] sm:$0xff]
  %v34 = vld [vmem:[%s1] sm:$0xf]
  %v35 = vld [vmem:[%s1 + $0x4] sm:$0xf]
  %v36 = vld [vmem:[%s1 + $0x8] sm:$0xf]
  %v37 = vld [vmem:[%s1 + $0xc] sm:$0xf]
  %v38 = vld [vmem:[%s1 + $0x10] sm:$0xf]
  %v39 = vld [vmem:[%s1 + $0x14] sm:$0xf]
  %v40 = vld [vmem:[%s1 + $0x18] sm:$0xf]
  %v41 = vld [vmem:[%s1 + $0x1c] sm:$0xf]
  %v42 = vld [vmem:[%s1 + $0x20] sm:$0xf]
  %v43 = vld [vmem:[%s1 + $0x24] sm:$0xf]
  %v44 = vld [vmem:[%s1 + $0x28] sm:$0xf]
  %v45 = vld [vmem:[%s1 + $0x2c] sm:$0xf]
  %v46 = vld [vmem:[%s1 + $0x30] sm:$0xf]
  %v47 = vld [vmem:[%s1 + $0x34] sm:$0xf]
  %v48 = vld [vmem:[%s1 + $0x38] sm:$0xf]
  %v49 = vld [vmem:[%s1 + $0x3c] sm:$0xf]
  %v50 = vld [vmem:[%s1 + $0x40] sm:$0xf]
  %v51 = vld [vmem:[%s1 + $0x44] sm:$0xf]
  %v52 = vld [vmem:[%s1 + $0x48] sm:$0xf]
  %v53 = vld [vmem:[%s1 + $0x4c] sm:$0xf]
  %v54 = vld [vmem:[%s1 + $0x50] sm:$0xf]
  %v55 = vld [vmem:[%s1 + $0x54] sm:$0xf]
  %v56 = vld [vmem:[%s1 + $0x58] sm:$0xf]
  %v57 = vld [vmem:[%s1 + $0x5c] sm:$0xf]
  %v58 = vld [vmem:[%s1 + $0x60] sm:$0xf]
  %v59 = vld [vmem:[%s1 + $0x64] sm:$0xf]
  %v60 = vld [vmem:[%s1 + $0x68] sm:$0xf]
  %v77 = vunpack.c.l.b16 %v18
  %v78 = vunpack.c.h.b16 %v18
  %v79 = vunpack.c.l.b16 %v19
  %v80 = vunpack.c.h.b16 %v19
  %v81 = vunpack.c.l.b16 %v20
  %v82 = vunpack.c.h.b16 %v20
  %v83 = vunpack.c.l.b16 %v21
  %v84 = vunpack.c.h.b16 %v21
  %v85 = vunpack.c.l.b16 %v22
  %v86 = vunpack.c.h.b16 %v22
  %v87 = vunpack.c.l.b16 %v23
  %v88 = vunpack.c.h.b16 %v23
  %v89 = vunpack.c.l.b16 %v24
  %v90 = vunpack.c.h.b16 %v24
  %v91 = vunpack.c.l.b16 %v25
  %v92 = vunpack.c.h.b16 %v25
  %v93 = vunpack.c.l.b16 %v26
  %v94 = vunpack.c.h.b16 %v26
  %v95 = vunpack.c.l.b16 %v27
  %v96 = vunpack.c.h.b16 %v27
  %v97 = vunpack.c.l.b16 %v28
  %v98 = vunpack.c.h.b16 %v28
  %v99 = vunpack.c.l.b16 %v29
  %v100 = vunpack.c.h.b16 %v29
  %v101 = vunpack.c.l.b16 %v30
  %v102 = vunpack.c.h.b16 %v30
  %v103 = vunpack.c.l.b16 %v31
  %v104 = vunpack.c.h.b16 %v31
  %v105 = vunpack.c.l.b16 %v32
  %v106 = vunpack.c.h.b16 %v32
  %v107 = vunpack.c.l.b16 %v33
  %v108 = vunpack.c.h.b16 %v33
  %v109 = vpack.c.b16 %v79, %v77
  %v110 = vpack.c.b16 %v80, %v78
  %v111 = vpack.c.b16 %v83, %v81
  %v112 = vpack.c.b16 %v84, %v82
  %v113 = vpack.c.b16 %v87, %v85
  %v114 = vpack.c.b16 %v88, %v86
  %v115 = vpack.c.b16 %v91, %v89
  %v116 = vpack.c.b16 %v92, %v90
  %v117 = vpack.c.b16 %v95, %v93
  %v118 = vpack.c.b16 %v96, %v94
  %v119 = vpack.c.b16 %v99, %v97
  %v120 = vpack.c.b16 %v100, %v98
  %v121 = vpack.c.b16 %v103, %v101
  %v122 = vpack.c.b16 %v104, %v102
  %v123 = vpack.c.b16 %v107, %v105
  %v124 = vpack.c.b16 %v108, %v106
  %v160 = vunpack.c.l.b16 %v34
  %v161 = vunpack.c.l.b16 %v35
  %v162 = vunpack.c.l.b16 %v36
  %v163 = vunpack.c.l.b16 %v37
  %v164 = vunpack.c.l.b16 %v38
  %v165 = vunpack.c.l.b16 %v39
  %v166 = vunpack.c.l.b16 %v40
  %v167 = vunpack.c.l.b16 %v41
  %v168 = vunpack.c.l.b16 %v42
  %v169 = vunpack.c.l.b16 %v43
  %v170 = vunpack.c.l.b16 %v44
  %v171 = vunpack.c.l.b16 %v45
  %v172 = vunpack.c.l.b16 %v46
  %v173 = vunpack.c.l.b16 %v47
  %v174 = vunpack.c.l.b16 %v48
  %v175 = vunpack.c.l.b16 %v49
  %v176 = vunpack.c.l.b16 %v50
  %v177 = vunpack.c.l.b16 %v51
  %v178 = vunpack.c.l.b16 %v52
  %v179 = vunpack.c.l.b16 %v53
  %v180 = vunpack.c.l.b16 %v54
  %v181 = vunpack.c.l.b16 %v55
  %v182 = vunpack.c.l.b16 %v56
  %v183 = vunpack.c.l.b16 %v57
  %v184 = vunpack.c.l.b16 %v58
  %v185 = vunpack.c.l.b16 %v59
  %v186 = vunpack.c.l.b16 %v60
  %v187 = vpack.c.b16 %v161, %v160
  %v188 = vpack.c.b16 %v163, %v162
  %v189 = vpack.c.b16 %v165, %v164
  %v190 = vpack.c.b16 %v167, %v166
  %v191 = vpack.c.b16 %v169, %v168
  %v192 = vpack.c.b16 %v171, %v170
  %v193 = vpack.c.b16 %v173, %v172
  %v194 = vpack.c.b16 %v175, %v174
  %v195 = vpack.c.b16 %v177, %v176
  %v196 = vpack.c.b16 %v179, %v178
  %v197 = vpack.c.b16 %v181, %v180
  %v198 = vpack.c.b16 %v183, %v182
  %v199 = vpack.c.b16 %v185, %v184
  %v200 = vpack.c.b16 %v186, %v186
  %vm214 = vcmask 719872
  %v216 = vsel %vm214, %v110, 0
  %v219 = vsel %vm214, %v112, 0
  %v222 = vsel %vm214, %v114, 0
  %v225 = vsel %vm214, %v116, 0
  %v228 = vsel %vm214, %v118, 0
  %v231 = vsel %vm214, %v120, 0
  %v234 = vsel %vm214, %v122, 0
  %v237 = vsel %vm214, %v124, 0
  %vm239 = vcmask 1043456
  %v241 = vsel %vm239, %v200, 0
  %243 = vmatprep.subr.bf16.mxu0 0
  %244 = vmatpush1.bf16.msra.mxu0 %v194
  %245 = vmatprep.subr.bf16.mxu0 0
  %246 = vmatpush1.bf16.msra.mxu0 %v193
  %247 = vmatprep.subr.bf16.mxu0 0
  %248 = vmatpush1.bf16.msra.mxu0 %v192
  %249 = vmatprep.subr.bf16.mxu0 0
  %250 = vmatpush1.bf16.msra.mxu0 %v191
  %251 = vmatprep.subr.bf16.mxu0 0
  %252 = vmatpush1.bf16.msra.mxu0 %v190
  %253 = vmatprep.subr.bf16.mxu0 0
  %254 = vmatpush1.bf16.msra.mxu0 %v189
  %255 = vmatprep.subr.bf16.mxu0 0
  %256 = vmatpush1.bf16.msra.mxu0 %v188
  %257 = vmatprep.subr.bf16.mxu0 0
  %258 = vmatpush1.bf16.msra.mxu0 %v187
  %259 = vmatprep.subr.bf16.mxu0 0
  %260 = vmatpush2.bf16.msra.mxu0 0
  %261 = vmatprep.subr.bf16.mxu0 0
  %262 = vmatpush2.bf16.msra.mxu0 0
  %263 = vmatprep.subr.bf16.mxu0 0
  %264 = vmatpush2.bf16.msra.mxu0 %v241
  %265 = vmatprep.subr.bf16.mxu0 0
  %266 = vmatpush2.bf16.msra.mxu0 %v199
  %267 = vmatprep.subr.bf16.mxu0 0
  %268 = vmatpush2.bf16.msra.mxu0 %v198
  %269 = vmatprep.subr.bf16.mxu0 0
  %270 = vmatpush2.bf16.msra.mxu0 %v197
  %271 = vmatprep.subr.bf16.mxu0 0
  %272 = vmatpush2.bf16.msra.mxu0 %v196
  %273 = vmatprep.subr.bf16.mxu0 0
  %274 = vmatpush2.bf16.msra.mxu0 %v195
  %275 = vmatprep.mubr.bf16.mxu0 %v216
  %276 = vmatmul.mubr.bf16.gmra.mxu0 %v109
  %v277 = vpop.f32.mrf.mxu0
  %v278 = vadd.f32 0.0, %v277
  %v279 = vpop.f32.mrf.mxu0
  %v280 = vpop.f32.mrf.mxu0
  %v281 = vadd.f32 0.0, %v280
  %v282 = vpop.f32.mrf.mxu0
  %283 = vmatprep.mubr.bf16.mxu0 %v219
  %284 = vmatmul.mubr.bf16.gmra.mxu0 %v111
  %v285 = vpop.f32.mrf.mxu0
  %v286 = vadd.f32 0.0, %v285
  %v287 = vpop.f32.mrf.mxu0
  %v288 = vpop.f32.mrf.mxu0
  %v289 = vadd.f32 0.0, %v288
  %v290 = vpop.f32.mrf.mxu0
  %291 = vmatprep.mubr.bf16.mxu0 %v222
  %292 = vmatmul.mubr.bf16.gmra.mxu0 %v113
  %v293 = vpop.f32.mrf.mxu0
  %v294 = vadd.f32 0.0, %v293
  %v295 = vpop.f32.mrf.mxu0
  %v296 = vpop.f32.mrf.mxu0
  %v297 = vadd.f32 0.0, %v296
  %v298 = vpop.f32.mrf.mxu0
  %299 = vmatprep.mubr.bf16.mxu0 %v225
  %300 = vmatmul.mubr.bf16.gmra.mxu0 %v115
  %v301 = vpop.f32.mrf.mxu0
  %v302 = vadd.f32 0.0, %v301
  %v303 = vpop.f32.mrf.mxu0
  %v304 = vpop.f32.mrf.mxu0
  %v305 = vadd.f32 0.0, %v304
  %v306 = vpop.f32.mrf.mxu0
  %307 = vmatprep.mubr.bf16.mxu0 %v228
  %308 = vmatmul.mubr.bf16.gmra.mxu0 %v117
  %v309 = vpop.f32.mrf.mxu0
  %v310 = vadd.f32 0.0, %v309
  %v311 = vpop.f32.mrf.mxu0
  %v312 = vpop.f32.mrf.mxu0
  %v313 = vadd.f32 0.0, %v312
  %v314 = vpop.f32.mrf.mxu0
  %315 = vmatprep.mubr.bf16.mxu0 %v231
  %316 = vmatmul.mubr.bf16.gmra.mxu0 %v119
  %v317 = vpop.f32.mrf.mxu0
  %v318 = vadd.f32 0.0, %v317
  %v319 = vpop.f32.mrf.mxu0
  %v320 = vpop.f32.mrf.mxu0
  %v321 = vadd.f32 0.0, %v320
  %v322 = vpop.f32.mrf.mxu0
  %323 = vmatprep.mubr.bf16.mxu0 %v234
  %324 = vmatmul.mubr.bf16.gmra.mxu0 %v121
  %v325 = vpop.f32.mrf.mxu0
  %v326 = vadd.f32 0.0, %v325
  %v327 = vpop.f32.mrf.mxu0
  %v328 = vpop.f32.mrf.mxu0
  %v329 = vadd.f32 0.0, %v328
  %v330 = vpop.f32.mrf.mxu0
  %331 = vmatprep.mubr.bf16.mxu0 %v237
  %332 = vmatmul.mubr.bf16.gmra.mxu0 %v123
  %v333 = vpop.f32.mrf.mxu0
  %v334 = vadd.f32 0.0, %v333
  %v335 = vpop.f32.mrf.mxu0
  %v336 = vpop.f32.mrf.mxu0
  %v337 = vadd.f32 0.0, %v336
  %v338 = vpop.f32.mrf.mxu0
  %339 = vdwg.mxu0
  %v340 = vld [vmem:[%s2] sm:$0x1]
  %v342 = vlaneseq
  %v343 = vshrl.u32 %v342, 7
  %v344 = vsub.s32 0, %v343
  %v345 = vrot.slane %v340, %v344
  %v347 = vmul.f32 %v278, %v345
  %v348 = vmul.f32 %v281, %v345
  %v349 = vmul.f32 %v286, %v345
  %v350 = vmul.f32 %v289, %v345
  %v351 = vmul.f32 %v294, %v345
  %v352 = vmul.f32 %v297, %v345
  %v353 = vmul.f32 %v302, %v345
  %v354 = vmul.f32 %v305, %v345
  %v355 = vmul.f32 %v310, %v345
  %v356 = vmul.f32 %v313, %v345
  %v357 = vmul.f32 %v318, %v345
  %v358 = vmul.f32 %v321, %v345
  %v359 = vmul.f32 %v326, %v345
  %v360 = vmul.f32 %v329, %v345
  %v361 = vmul.f32 %v334, %v345
  %v362 = vmul.f32 %v337, %v345
  %v363 = vld [vmem:[%s3] sm:$0x1]
  %v365 = vlaneseq
  %v366 = vshrl.u32 %v365, 7
  %v367 = vsub.s32 0, %v366
  %v368 = vrot.slane %v363, %v367
  %v370 = vadd.f32 %v347, %v368
  %v371 = vadd.f32 %v348, %v368
  %v372 = vadd.f32 %v349, %v368
  %v373 = vadd.f32 %v350, %v368
  %v374 = vadd.f32 %v351, %v368
  %v375 = vadd.f32 %v352, %v368
  %v376 = vadd.f32 %v353, %v368
  %v377 = vadd.f32 %v354, %v368
  %v378 = vadd.f32 %v355, %v368
  %v379 = vadd.f32 %v356, %v368
  %v380 = vadd.f32 %v357, %v368
  %v381 = vadd.f32 %v358, %v368
  %v382 = vadd.f32 %v359, %v368
  %v383 = vadd.f32 %v360, %v368
  %v384 = vadd.f32 %v361, %v368
  %v385 = vadd.f32 %v362, %v368
  %v386 = vmax.f32 %v370, 0.0
  %v387 = vmax.f32 %v371, 0.0
  %v388 = vmax.f32 %v372, 0.0
  %v389 = vmax.f32 %v373, 0.0
  %v390 = vmax.f32 %v374, 0.0
  %v391 = vmax.f32 %v375, 0.0
  %v392 = vmax.f32 %v376, 0.0
  %v393 = vmax.f32 %v377, 0.0
  %v394 = vmax.f32 %v378, 0.0
  %v395 = vmax.f32 %v379, 0.0
  %v396 = vmax.f32 %v380, 0.0
  %v397 = vmax.f32 %v381, 0.0
  %v398 = vmax.f32 %v382, 0.0
  %v399 = vmax.f32 %v383, 0.0
  %v400 = vmax.f32 %v384, 0.0
  %v401 = vmax.f32 %v385, 0.0
  %402 = vst [vmem:[%s4] sm:$0xff] %v386
  %403 = vst [vmem:[%s4 + $0x8] sm:$0xff] %v387
  %404 = vst [vmem:[%s4 + $0x10] sm:$0xff] %v388
  %405 = vst [vmem:[%s4 + $0x18] sm:$0xff] %v389
  %406 = vst [vmem:[%s4 + $0x20] sm:$0xff] %v390
  %407 = vst [vmem:[%s4 + $0x28] sm:$0xff] %v391
  %408 = vst [vmem:[%s4 + $0x30] sm:$0xff] %v392
  %409 = vst [vmem:[%s4 + $0x38] sm:$0xff] %v393
  %410 = vst [vmem:[%s4 + $0x40] sm:$0xff] %v394
  %411 = vst [vmem:[%s4 + $0x48] sm:$0xff] %v395
  %412 = vst [vmem:[%s4 + $0x50] sm:$0xff] %v396
  %413 = vst [vmem:[%s4 + $0x58] sm:$0xff] %v397
  %414 = vst [vmem:[%s4 + $0x60] sm:$0xff] %v398
  %415 = vst [vmem:[%s4 + $0x68] sm:$0xff] %v399
  %416 = vst [vmem:[%s4 + $0x70] sm:$0xff] %v400
  %417 = vst [vmem:[%s4 + $0x78] sm:$0xff] %v401
  // Predicated region
  $region18: #{_lambda_.8} parent=0 // pred_check
    _
  $region19: #{_lambda_.8} parent=0 // pred_check_branch
    %419 = sbr.rel (0) target = $region21
  $region20: #{_lambda_.8} parent=0 // pred_region
    _
  $region21: #{_lambda_.8} parent=0 // pred_fallthru
    _
  // Predicated region
  $region22: #{_lambda_.8} parent=0 // pred_check
    _
  $region23: #{_lambda_.8} parent=0 // pred_check_branch
    %421 = sbr.rel (0) target = $region25
  $region24: #{_lambda_.8} parent=0 // pred_region
    _
  $region25: #{_lambda_.8} parent=0 // pred_fallthru
    _

// kernel: _lambda_.9
$region0: #{_lambda_.9}
  #allocation0 [shape = 'u32[]', space=smem, size = 0x4, offset = 0x4, fixed_abs, tag = 'smem constant byte address 0x4 - core index']
  #allocation1 [shape = 'u32[144,128]{1,0:T(1,128)}', space=vmem, size = 0x12000, scoped, tag = 'internal scratch']
  %s0 = inlined_call_operand.vmem [shape: bf16[16,216], index: 0, kind: input, shape index: {}]
  %s1 = inlined_call_operand.vmem [shape: bf16[216,128], index: 1, kind: input, shape index: {}]
  %s2 = inlined_call_operand.vmem [shape: f32[1,128], index: 2, kind: input, shape index: {}]
  %s3 = inlined_call_operand.vmem [shape: f32[1,128], index: 3, kind: input, shape index: {}]
  %s4 = inlined_call_operand.vmem [shape: f32[16,128], index: 4, kind: output, shape index: {}]
  %s5 = sld [smem:[#allocation0]]
  $region26: #{_lambda_.9} parent=0
    _
  %s7 = ssub.s32 1, %s5
  %s8 = scalar_select 0, %s7, %s5
  // Predicated region
  $region2: #{_lambda_.9} parent=0 // pred_check
    _
  $region3: #{_lambda_.9} parent=0 // pred_check_branch
    %10 = sbr.rel (0) target = $region5
  $region4: #{_lambda_.9} parent=0 // pred_region
    _
  $region5: #{_lambda_.9} parent=0 // pred_fallthru
    _
  // Predicated region
  $region6: #{_lambda_.9} parent=0 // pred_check
    _
  $region7: #{_lambda_.9} parent=0 // pred_check_branch
    %12 = sbr.rel (0) target = $region9
  $region8: #{_lambda_.9} parent=0 // pred_region
    _
  $region9: #{_lambda_.9} parent=0 // pred_fallthru
    _
  // Predicated region
  $region10: #{_lambda_.9} parent=0 // pred_check
    _
  $region11: #{_lambda_.9} parent=0 // pred_check_branch
    %14 = sbr.rel (0) target = $region13
  $region12: #{_lambda_.9} parent=0 // pred_region
    _
  $region13: #{_lambda_.9} parent=0 // pred_fallthru
    _
  // Predicated region
  $region14: #{_lambda_.9} parent=0 // pred_check
    _
  $region15: #{_lambda_.9} parent=0 // pred_check_branch
    %16 = sbr.rel (0) target = $region17
  $region16: #{_lambda_.9} parent=0 // pred_region
    _
  $region17: #{_lambda_.9} parent=0 // pred_fallthru
    _
  %v18 = vld [vmem:[%s0] sm:$0xff]
  %v19 = vld [vmem:[%s0 + $0x8] sm:$0xff]
  %v20 = vld [vmem:[%s1] sm:$0xf]
  %v21 = vld [vmem:[%s1 + $0x4] sm:$0xf]
  %v22 = vld [vmem:[%s1 + $0x8] sm:$0xf]
  %v23 = vld [vmem:[%s1 + $0xc] sm:$0xf]
  %v24 = vld [vmem:[%s1 + $0x10] sm:$0xf]
  %v25 = vld [vmem:[%s1 + $0x14] sm:$0xf]
  %v26 = vld [vmem:[%s1 + $0x18] sm:$0xf]
  %v27 = vld [vmem:[%s1 + $0x1c] sm:$0xf]
  %v28 = vld [vmem:[%s1 + $0x20] sm:$0xf]
  %v29 = vld [vmem:[%s1 + $0x24] sm:$0xf]
  %v30 = vld [vmem:[%s1 + $0x28] sm:$0xf]
  %v31 = vld [vmem:[%s1 + $0x2c] sm:$0xf]
  %v32 = vld [vmem:[%s1 + $0x30] sm:$0xf]
  %v33 = vld [vmem:[%s1 + $0x34] sm:$0xf]
  %v34 = vld [vmem:[%s1 + $0x38] sm:$0xf]
  %v35 = vld [vmem:[%s1 + $0x3c] sm:$0xf]
  %v36 = vld [vmem:[%s1 + $0x40] sm:$0xf]
  %v37 = vld [vmem:[%s1 + $0x44] sm:$0xf]
  %v38 = vld [vmem:[%s1 + $0x48] sm:$0xf]
  %v39 = vld [vmem:[%s1 + $0x4c] sm:$0xf]
  %v40 = vld [vmem:[%s1 + $0x50] sm:$0xf]
  %v41 = vld [vmem:[%s1 + $0x54] sm:$0xf]
  %v42 = vld [vmem:[%s1 + $0x58] sm:$0xf]
  %v43 = vld [vmem:[%s1 + $0x5c] sm:$0xf]
  %v44 = vld [vmem:[%s1 + $0x60] sm:$0xf]
  %v45 = vld [vmem:[%s1 + $0x64] sm:$0xf]
  %v46 = vld [vmem:[%s1 + $0x68] sm:$0xf]
  %v49 = vunpack.c.l.b16 %v18
  %v50 = vunpack.c.h.b16 %v18
  %v51 = vunpack.c.l.b16 %v19
  %v52 = vunpack.c.h.b16 %v19
  %v53 = vpack.c.b16 %v51, %v49
  %v54 = vpack.c.b16 %v52, %v50
  %v83 = vunpack.c.l.b16 %v20
  %v84 = vunpack.c.l.b16 %v21
  %v85 = vunpack.c.l.b16 %v22
  %v86 = vunpack.c.l.b16 %v23
  %v87 = vunpack.c.l.b16 %v24
  %v88 = vunpack.c.l.b16 %v25
  %v89 = vunpack.c.l.b16 %v26
  %v90 = vunpack.c.l.b16 %v27
  %v91 = vunpack.c.l.b16 %v28
  %v92 = vunpack.c.l.b16 %v29
  %v93 = vunpack.c.l.b16 %v30
  %v94 = vunpack.c.l.b16 %v31
  %v95 = vunpack.c.l.b16 %v32
  %v96 = vunpack.c.l.b16 %v33
  %v97 = vunpack.c.l.b16 %v34
  %v98 = vunpack.c.l.b16 %v35
  %v99 = vunpack.c.l.b16 %v36
  %v100 = vunpack.c.l.b16 %v37
  %v101 = vunpack.c.l.b16 %v38
  %v102 = vunpack.c.l.b16 %v39
  %v103 = vunpack.c.l.b16 %v40
  %v104 = vunpack.c.l.b16 %v41
  %v105 = vunpack.c.l.b16 %v42
  %v106 = vunpack.c.l.b16 %v43
  %v107 = vunpack.c.l.b16 %v44
  %v108 = vunpack.c.l.b16 %v45
  %v109 = vunpack.c.l.b16 %v46
  %v110 = vpack.c.b16 %v84, %v83
  %v111 = vpack.c.b16 %v86, %v85
  %v112 = vpack.c.b16 %v88, %v87
  %v113 = vpack.c.b16 %v90, %v89
  %v114 = vpack.c.b16 %v92, %v91
  %v115 = vpack.c.b16 %v94, %v93
  %v116 = vpack.c.b16 %v96, %v95
  %v117 = vpack.c.b16 %v98, %v97
  %v118 = vpack.c.b16 %v100, %v99
  %v119 = vpack.c.b16 %v102, %v101
  %v120 = vpack.c.b16 %v104, %v103
  %v121 = vpack.c.b16 %v106, %v105
  %v122 = vpack.c.b16 %v108, %v107
  %v123 = vpack.c.b16 %v109, %v109
  %vm137 = vcmask 719872
  %v139 = vsel %vm137, %v54, 0
  %vm141 = vcmask 1043456
  %v143 = vsel %vm141, %v123, 0
  %145 = vmatprep.subr.bf16.mxu0 0
  %146 = vmatpush1.bf16.msra.mxu0 %v117
  %147 = vmatprep.subr.bf16.mxu0 0
  %148 = vmatpush1.bf16.msra.mxu0 %v116
  %149 = vmatprep.subr.bf16.mxu0 0
  %150 = vmatpush1.bf16.msra.mxu0 %v115
  %151 = vmatprep.subr.bf16.mxu0 0
  %152 = vmatpush1.bf16.msra.mxu0 %v114
  %153 = vmatprep.subr.bf16.mxu0 0
  %154 = vmatpush1.bf16.msra.mxu0 %v113
  %155 = vmatprep.subr.bf16.mxu0 0
  %156 = vmatpush1.bf16.msra.mxu0 %v112
  %157 = vmatprep.subr.bf16.mxu0 0
  %158 = vmatpush1.bf16.msra.mxu0 %v111
  %159 = vmatprep.subr.bf16.mxu0 0
  %160 = vmatpush1.bf16.msra.mxu0 %v110
  %161 = vmatprep.subr.bf16.mxu0 0
  %162 = vmatpush2.bf16.msra.mxu0 0
  %163 = vmatprep.subr.bf16.mxu0 0
  %164 = vmatpush2.bf16.msra.mxu0 0
  %165 = vmatprep.subr.bf16.mxu0 0
  %166 = vmatpush2.bf16.msra.mxu0 %v143
  %167 = vmatprep.subr.bf16.mxu0 0
  %168 = vmatpush2.bf16.msra.mxu0 %v122
  %169 = vmatprep.subr.bf16.mxu0 0
  %170 = vmatpush2.bf16.msra.mxu0 %v121
  %171 = vmatprep.subr.bf16.mxu0 0
  %172 = vmatpush2.bf16.msra.mxu0 %v120
  %173 = vmatprep.subr.bf16.mxu0 0
  %174 = vmatpush2.bf16.msra.mxu0 %v119
  %175 = vmatprep.subr.bf16.mxu0 0
  %176 = vmatpush2.bf16.msra.mxu0 %v118
  %177 = vmatprep.mubr.bf16.mxu0 %v139
  %178 = vmatmul.mubr.bf16.gmra.mxu0 %v53
  %v179 = vpop.f32.mrf.mxu0
  %v180 = vadd.f32 0.0, %v179
  %v181 = vpop.f32.mrf.mxu0
  %v182 = vpop.f32.mrf.mxu0
  %v183 = vadd.f32 0.0, %v182
  %v184 = vpop.f32.mrf.mxu0
  %185 = vdwg.mxu0
  %v186 = vld [vmem:[%s2] sm:$0x1]
  %v188 = vlaneseq
  %v189 = vshrl.u32 %v188, 7
  %v190 = vsub.s32 0, %v189
  %v191 = vrot.slane %v186, %v190
  %v193 = vmul.f32 %v180, %v191
  %v194 = vmul.f32 %v183, %v191
  %v195 = vld [vmem:[%s3] sm:$0x1]
  %v197 = vlaneseq
  %v198 = vshrl.u32 %v197, 7
  %v199 = vsub.s32 0, %v198
  %v200 = vrot.slane %v195, %v199
  %v202 = vadd.f32 %v193, %v200
  %v203 = vadd.f32 %v194, %v200
  %v204 = vmax.f32 %v202, 0.0
  %v205 = vmax.f32 %v203, 0.0
  %206 = vst [vmem:[%s4] sm:$0xff] %v204
  %207 = vst [vmem:[%s4 + $0x8] sm:$0xff] %v205
  // Predicated region
  $region18: #{_lambda_.9} parent=0 // pred_check
    _
  $region19: #{_lambda_.9} parent=0 // pred_check_branch
    %209 = sbr.rel (0) target = $region21
  $region20: #{_lambda_.9} parent=0 // pred_region
    _
  $region21: #{_lambda_.9} parent=0 // pred_fallthru
    _
  // Predicated region
  $region22: #{_lambda_.9} parent=0 // pred_check
    _
  $region23: #{_lambda_.9} parent=0 // pred_check_branch
    %211 = sbr.rel (0) target = $region25
  $region24: #{_lambda_.9} parent=0 // pred_region
    _
  $region25: #{_lambda_.9} parent=0 // pred_fallthru
    _

// kernel: _lambda_.10
$region0: #{_lambda_.10}
  #allocation0 [shape = 'u32[]', space=smem, size = 0x4, offset = 0x4, fixed_abs, tag = 'smem constant byte address 0x4 - core index']
  #allocation1 [shape = 'u32[144,128]{1,0:T(1,128)}', space=vmem, size = 0x12000, scoped, tag = 'internal scratch']
  %s0 = inlined_call_operand.vmem [shape: bf16[16,432], index: 0, kind: input, shape index: {}]
  %s1 = inlined_call_operand.vmem [shape: bf16[432,128], index: 1, kind: input, shape index: {}]
  %s2 = inlined_call_operand.vmem [shape: f32[1,128], index: 2, kind: input, shape index: {}]
  %s3 = inlined_call_operand.vmem [shape: f32[1,128], index: 3, kind: input, shape index: {}]
  %s4 = inlined_call_operand.vmem [shape: f32[16,128], index: 4, kind: output, shape index: {}]
  %s5 = sld [smem:[#allocation0]]
  $region26: #{_lambda_.10} parent=0
    _
  %s7 = ssub.s32 1, %s5
  %s8 = scalar_select 0, %s7, %s5
  // Predicated region
  $region2: #{_lambda_.10} parent=0 // pred_check
    _
  $region3: #{_lambda_.10} parent=0 // pred_check_branch
    %10 = sbr.rel (0) target = $region5
  $region4: #{_lambda_.10} parent=0 // pred_region
    _
  $region5: #{_lambda_.10} parent=0 // pred_fallthru
    _
  // Predicated region
  $region6: #{_lambda_.10} parent=0 // pred_check
    _
  $region7: #{_lambda_.10} parent=0 // pred_check_branch
    %12 = sbr.rel (0) target = $region9
  $region8: #{_lambda_.10} parent=0 // pred_region
    _
  $region9: #{_lambda_.10} parent=0 // pred_fallthru
    _
  // Predicated region
  $region10: #{_lambda_.10} parent=0 // pred_check
    _
  $region11: #{_lambda_.10} parent=0 // pred_check_branch
    %14 = sbr.rel (0) target = $region13
  $region12: #{_lambda_.10} parent=0 // pred_region
    _
  $region13: #{_lambda_.10} parent=0 // pred_fallthru
    _
  // Predicated region
  $region14: #{_lambda_.10} parent=0 // pred_check
    _
  $region15: #{_lambda_.10} parent=0 // pred_check_branch
    %16 = sbr.rel (0) target = $region17
  $region16: #{_lambda_.10} parent=0 // pred_region
    _
  $region17: #{_lambda_.10} parent=0 // pred_fallthru
    _
  %v18 = vld [vmem:[%s0] sm:$0xff]
  %v19 = vld [vmem:[%s0 + $0x8] sm:$0xff]
  %v20 = vld [vmem:[%s0 + $0x10] sm:$0xff]
  %v21 = vld [vmem:[%s0 + $0x18] sm:$0xff]
  %v22 = vld [vmem:[%s1] sm:$0xf]
  %v23 = vld [vmem:[%s1 + $0x4] sm:$0xf]
  %v24 = vld [vmem:[%s1 + $0x8] sm:$0xf]
  %v25 = vld [vmem:[%s1 + $0xc] sm:$0xf]
  %v26 = vld [vmem:[%s1 + $0x10] sm:$0xf]
  %v27 = vld [vmem:[%s1 + $0x14] sm:$0xf]
  %v28 = vld [vmem:[%s1 + $0x18] sm:$0xf]
  %v29 = vld [vmem:[%s1 + $0x1c] sm:$0xf]
  %v30 = vld [vmem:[%s1 + $0x20] sm:$0xf]
  %v31 = vld [vmem:[%s1 + $0x24] sm:$0xf]
  %v32 = vld [vmem:[%s1 + $0x28] sm:$0xf]
  %v33 = vld [vmem:[%s1 + $0x2c] sm:$0xf]
  %v34 = vld [vmem:[%s1 + $0x30] sm:$0xf]
  %v35 = vld [vmem:[%s1 + $0x34] sm:$0xf]
  %v36 = vld [vmem:[%s1 + $0x38] sm:$0xf]
  %v37 = vld [vmem:[%s1 + $0x3c] sm:$0xf]
  %v38 = vld [vmem:[%s1 + $0x40] sm:$0xf]
  %v39 = vld [vmem:[%s1 + $0x44] sm:$0xf]
  %v40 = vld [vmem:[%s1 + $0x48] sm:$0xf]
  %v41 = vld [vmem:[%s1 + $0x4c] sm:$0xf]
  %v42 = vld [vmem:[%s1 + $0x50] sm:$0xf]
  %v43 = vld [vmem:[%s1 + $0x54] sm:$0xf]
  %v44 = vld [vmem:[%s1 + $0x58] sm:$0xf]
  %v45 = vld [vmem:[%s1 + $0x5c] sm:$0xf]
  %v46 = vld [vmem:[%s1 + $0x60] sm:$0xf]
  %v47 = vld [vmem:[%s1 + $0x64] sm:$0xf]
  %v48 = vld [vmem:[%s1 + $0x68] sm:$0xf]
  %v49 = vld [vmem:[%s1 + $0x6c] sm:$0xf]
  %v50 = vld [vmem:[%s1 + $0x70] sm:$0xf]
  %v51 = vld [vmem:[%s1 + $0x74] sm:$0xf]
  %v52 = vld [vmem:[%s1 + $0x78] sm:$0xf]
  %v53 = vld [vmem:[%s1 + $0x7c] sm:$0xf]
  %v54 = vld [vmem:[%s1 + $0x80] sm:$0xf]
  %v55 = vld [vmem:[%s1 + $0x84] sm:$0xf]
  %v56 = vld [vmem:[%s1 + $0x88] sm:$0xf]
  %v57 = vld [vmem:[%s1 + $0x8c] sm:$0xf]
  %v58 = vld [vmem:[%s1 + $0x90] sm:$0xf]
  %v59 = vld [vmem:[%s1 + $0x94] sm:$0xf]
  %v60 = vld [vmem:[%s1 + $0x98] sm:$0xf]
  %v61 = vld [vmem:[%s1 + $0x9c] sm:$0xf]
  %v62 = vld [vmem:[%s1 + $0xa0] sm:$0xf]
  %v63 = vld [vmem:[%s1 + $0xa4] sm:$0xf]
  %v64 = vld [vmem:[%s1 + $0xa8] sm:$0xf]
  %v65 = vld [vmem:[%s1 + $0xac] sm:$0xf]
  %v66 = vld [vmem:[%s1 + $0xb0] sm:$0xf]
  %v67 = vld [vmem:[%s1 + $0xb4] sm:$0xf]
  %v68 = vld [vmem:[%s1 + $0xb8] sm:$0xf]
  %v69 = vld [vmem:[%s1 + $0xbc] sm:$0xf]
  %v70 = vld [vmem:[%s1 + $0xc0] sm:$0xf]
  %v71 = vld [vmem:[%s1 + $0xc4] sm:$0xf]
  %v72 = vld [vmem:[%s1 + $0xc8] sm:$0xf]
  %v73 = vld [vmem:[%s1 + $0xcc] sm:$0xf]
  %v74 = vld [vmem:[%s1 + $0xd0] sm:$0xf]
  %v75 = vld [vmem:[%s1 + $0xd4] sm:$0xf]
  %v80 = vunpack.c.l.b16 %v18
  %v81 = vunpack.c.h.b16 %v18
  %v82 = vunpack.c.l.b16 %v19
  %v83 = vunpack.c.h.b16 %v19
  %v84 = vunpack.c.l.b16 %v20
  %v85 = vunpack.c.h.b16 %v20
  %v86 = vunpack.c.l.b16 %v21
  %v87 = vunpack.c.h.b16 %v21
  %v88 = vpack.c.b16 %v84, %v80
  %v89 = vpack.c.b16 %v85, %v81
  %v90 = vpack.c.b16 %v86, %v82
  %v91 = vpack.c.b16 %v87, %v83
  %v149 = vunpack.c.l.b16 %v22
  %v150 = vunpack.c.l.b16 %v23
  %v151 = vunpack.c.l.b16 %v24
  %v152 = vunpack.c.l.b16 %v25
  %v153 = vunpack.c.l.b16 %v26
  %v154 = vunpack.c.l.b16 %v27
  %v155 = vunpack.c.l.b16 %v28
  %v156 = vunpack.c.l.b16 %v29
  %v157 = vunpack.c.l.b16 %v30
  %v158 = vunpack.c.l.b16 %v31
  %v159 = vunpack.c.l.b16 %v32
  %v160 = vunpack.c.l.b16 %v33
  %v161 = vunpack.c.l.b16 %v34
  %v162 = vunpack.c.l.b16 %v35
  %v163 = vunpack.c.l.b16 %v36
  %v164 = vunpack.c.l.b16 %v37
  %v165 = vunpack.c.l.b16 %v38
  %v166 = vunpack.c.l.b16 %v39
  %v167 = vunpack.c.l.b16 %v40
  %v168 = vunpack.c.l.b16 %v41
  %v169 = vunpack.c.l.b16 %v42
  %v170 = vunpack.c.l.b16 %v43
  %v171 = vunpack.c.l.b16 %v44
  %v172 = vunpack.c.l.b16 %v45
  %v173 = vunpack.c.l.b16 %v46
  %v174 = vunpack.c.l.b16 %v47
  %v175 = vunpack.c.l.b16 %v48
  %v176 = vunpack.c.l.b16 %v49
  %v177 = vunpack.c.l.b16 %v50
  %v178 = vunpack.c.l.b16 %v51
  %v179 = vunpack.c.l.b16 %v52
  %v180 = vunpack.c.l.b16 %v53
  %v181 = vunpack.c.l.b16 %v54
  %v182 = vunpack.c.l.b16 %v55
  %v183 = vunpack.c.l.b16 %v56
  %v184 = vunpack.c.l.b16 %v57
  %v185 = vunpack.c.l.b16 %v58
  %v186 = vunpack.c.l.b16 %v59
  %v187 = vunpack.c.l.b16 %v60
  %v188 = vunpack.c.l.b16 %v61
  %v189 = vunpack.c.l.b16 %v62
  %v190 = vunpack.c.l.b16 %v63
  %v191 = vunpack.c.l.b16 %v64
  %v192 = vunpack.c.l.b16 %v65
  %v193 = vunpack.c.l.b16 %v66
  %v194 = vunpack.c.l.b16 %v67
  %v195 = vunpack.c.l.b16 %v68
  %v196 = vunpack.c.l.b16 %v69
  %v197 = vunpack.c.l.b16 %v70
  %v198 = vunpack.c.l.b16 %v71
  %v199 = vunpack.c.l.b16 %v72
  %v200 = vunpack.c.l.b16 %v73
  %v201 = vunpack.c.l.b16 %v74
  %v202 = vunpack.c.l.b16 %v75
  %v203 = vpack.c.b16 %v150, %v149
  %v204 = vpack.c.b16 %v152, %v151
  %v205 = vpack.c.b16 %v154, %v153
  %v206 = vpack.c.b16 %v156, %v155
  %v207 = vpack.c.b16 %v158, %v157
  %v208 = vpack.c.b16 %v160, %v159
  %v209 = vpack.c.b16 %v162, %v161
  %v210 = vpack.c.b16 %v164, %v163
  %v211 = vpack.c.b16 %v166, %v165
  %v212 = vpack.c.b16 %v168, %v167
  %v213 = vpack.c.b16 %v170, %v169
  %v214 = vpack.c.b16 %v172, %v171
  %v215 = vpack.c.b16 %v174, %v173
  %v216 = vpack.c.b16 %v176, %v175
  %v217 = vpack.c.b16 %v178, %v177
  %v218 = vpack.c.b16 %v180, %v179
  %v219 = vpack.c.b16 %v182, %v181
  %v220 = vpack.c.b16 %v184, %v183
  %v221 = vpack.c.b16 %v186, %v185
  %v222 = vpack.c.b16 %v188, %v187
  %v223 = vpack.c.b16 %v190, %v189
  %v224 = vpack.c.b16 %v192, %v191
  %v225 = vpack.c.b16 %v194, %v193
  %v226 = vpack.c.b16 %v196, %v195
  %v227 = vpack.c.b16 %v198, %v197
  %v228 = vpack.c.b16 %v200, %v199
  %v229 = vpack.c.b16 %v202, %v201
  %vm257 = vcmask 392192
  %v259 = vsel %vm257, %v91, 0
  %261 = vmatprep.subr.bf16.mxu0 0
  %262 = vmatpush1.bf16.msra.mxu0 %v210
  %263 = vmatprep.subr.bf16.mxu0 0
  %264 = vmatpush1.bf16.msra.mxu0 %v209
  %265 = vmatprep.subr.bf16.mxu0 0
  %266 = vmatpush1.bf16.msra.mxu0 %v208
  %267 = vmatprep.subr.bf16.mxu0 0
  %268 = vmatpush1.bf16.msra.mxu0 %v207
  %269 = vmatprep.subr.bf16.mxu0 0
  %270 = vmatpush1.bf16.msra.mxu0 %v206
  %271 = vmatprep.subr.bf16.mxu0 0
  %272 = vmatpush1.bf16.msra.mxu0 %v205
  %273 = vmatprep.subr.bf16.mxu0 0
  %274 = vmatpush1.bf16.msra.mxu0 %v204
  %275 = vmatprep.subr.bf16.mxu0 0
  %276 = vmatpush1.bf16.msra.mxu0 %v203
  %277 = vmatprep.subr.bf16.mxu0 0
  %278 = vmatpush2.bf16.msra.mxu0 %v218
  %279 = vmatprep.subr.bf16.mxu0 0
  %280 = vmatpush2.bf16.msra.mxu0 %v217
  %281 = vmatprep.subr.bf16.mxu0 0
  %282 = vmatpush2.bf16.msra.mxu0 %v216
  %283 = vmatprep.subr.bf16.mxu0 0
  %284 = vmatpush2.bf16.msra.mxu0 %v215
  %285 = vmatprep.subr.bf16.mxu0 0
  %286 = vmatpush2.bf16.msra.mxu0 %v214
  %287 = vmatprep.subr.bf16.mxu0 0
  %288 = vmatpush2.bf16.msra.mxu0 %v213
  %289 = vmatprep.subr.bf16.mxu0 0
  %290 = vmatpush2.bf16.msra.mxu0 %v212
  %291 = vmatprep.subr.bf16.mxu0 0
  %292 = vmatpush2.bf16.msra.mxu0 %v211
  %293 = vmatprep.mubr.bf16.mxu0 %v89
  %294 = vmatmul.mubr.bf16.gmra.mxu0 %v88
  %v295 = vpop.f32.mrf.mxu0
  %v296 = vadd.f32 0.0, %v295
  %v297 = vpop.f32.mrf.mxu0
  %v298 = vpop.f32.mrf.mxu0
  %v299 = vadd.f32 0.0, %v298
  %v300 = vpop.f32.mrf.mxu0
  %301 = vdwg.mxu0
  %302 = vmatprep.subr.bf16.mxu0 0
  %303 = vmatpush1.bf16.msra.mxu0 %v226
  %304 = vmatprep.subr.bf16.mxu0 0
  %305 = vmatpush1.bf16.msra.mxu0 %v225
  %306 = vmatprep.subr.bf16.mxu0 0
  %307 = vmatpush1.bf16.msra.mxu0 %v224
  %308 = vmatprep.subr.bf16.mxu0 0
  %309 = vmatpush1.bf16.msra.mxu0 %v223
  %310 = vmatprep.subr.bf16.mxu0 0
  %311 = vmatpush1.bf16.msra.mxu0 %v222
  %312 = vmatprep.subr.bf16.mxu0 0
  %313 = vmatpush1.bf16.msra.mxu0 %v221
  %314 = vmatprep.subr.bf16.mxu0 0
  %315 = vmatpush1.bf16.msra.mxu0 %v220
  %316 = vmatprep.subr.bf16.mxu0 0
  %317 = vmatpush1.bf16.msra.mxu0 %v219
  %318 = vmatprep.subr.bf16.mxu0 0
  %319 = vmatpush2.bf16.msra.mxu0 0
  %320 = vmatprep.subr.bf16.mxu0 0
  %321 = vmatpush2.bf16.msra.mxu0 0
  %322 = vmatprep.subr.bf16.mxu0 0
  %323 = vmatpush2.bf16.msra.mxu0 0
  %324 = vmatprep.subr.bf16.mxu0 0
  %325 = vmatpush2.bf16.msra.mxu0 0
  %326 = vmatprep.subr.bf16.mxu0 0
  %327 = vmatpush2.bf16.msra.mxu0 0
  %328 = vmatprep.subr.bf16.mxu0 0
  %329 = vmatpush2.bf16.msra.mxu0 %v229
  %330 = vmatprep.subr.bf16.mxu0 0
  %331 = vmatpush2.bf16.msra.mxu0 %v228
  %332 = vmatprep.subr.bf16.mxu0 0
  %333 = vmatpush2.bf16.msra.mxu0 %v227
  %334 = vmatprep.mubr.bf16.mxu0 %v259
  %335 = vmatmul.mubr.bf16.gmra.mxu0 %v90
  %v336 = vpop.f32.mrf.mxu0
  %v337 = vadd.f32 %v296, %v336
  %v338 = vpop.f32.mrf.mxu0
  %v339 = vpop.f32.mrf.mxu0
  %v340 = vadd.f32 %v299, %v339
  %v341 = vpop.f32.mrf.mxu0
  %342 = vdwg.mxu0
  %v343 = vld [vmem:[%s2] sm:$0x1]
  %v345 = vlaneseq
  %v346 = vshrl.u32 %v345, 7
  %v347 = vsub.s32 0, %v346
  %v348 = vrot.slane %v343, %v347
  %v350 = vmul.f32 %v337, %v348
  %v351 = vmul.f32 %v340, %v348
  %v352 = vld [vmem:[%s3] sm:$0x1]
  %v354 = vlaneseq
  %v355 = vshrl.u32 %v354, 7
  %v356 = vsub.s32 0, %v355
  %v357 = vrot.slane %v352, %v356
  %v359 = vadd.f32 %v350, %v357
  %v360 = vadd.f32 %v351, %v357
  %v361 = vmax.f32 %v359, 0.0
  %v362 = vmax.f32 %v360, 0.0
  %363 = vst [vmem:[%s4] sm:$0xff] %v361
  %364 = vst [vmem:[%s4 + $0x8] sm:$0xff] %v362
  // Predicated region
  $region18: #{_lambda_.10} parent=0 // pred_check
    _
  $region19: #{_lambda_.10} parent=0 // pred_check_branch
    %366 = sbr.rel (0) target = $region21
  $region20: #{_lambda_.10} parent=0 // pred_region
    _
  $region21: #{_lambda_.10} parent=0 // pred_fallthru
    _
  // Predicated region
  $region22: #{_lambda_.10} parent=0 // pred_check
    _
  $region23: #{_lambda_.10} parent=0 // pred_check_branch
    %368 = sbr.rel (0) target = $region25
  $region24: #{_lambda_.10} parent=0 // pred_region
    _
  $region25: #{_lambda_.10} parent=0 // pred_fallthru
    _

// kernel: _lambda_.12
$region0: #{_lambda_.12}
  #allocation0 [shape = 'u32[]', space=smem, size = 0x4, offset = 0x4, fixed_abs, tag = 'smem constant byte address 0x4 - core index']
  #allocation1 [shape = 'u32[144,128]{1,0:T(1,128)}', space=vmem, size = 0x12000, scoped, tag = 'internal scratch']
  %s0 = inlined_call_operand.vmem [shape: bf16[16,864], index: 0, kind: input, shape index: {}]
  %s1 = inlined_call_operand.vmem [shape: bf16[864,128], index: 1, kind: input, shape index: {}]
  %s2 = inlined_call_operand.vmem [shape: f32[1,128], index: 2, kind: input, shape index: {}]
  %s3 = inlined_call_operand.vmem [shape: f32[1,128], index: 3, kind: input, shape index: {}]
  %s4 = inlined_call_operand.vmem [shape: f32[16,128], index: 4, kind: output, shape index: {}]
  %s5 = sld [smem:[#allocation0]]
  $region26: #{_lambda_.12} parent=0
    _
  %s7 = ssub.s32 1, %s5
  %s8 = scalar_select 0, %s7, %s5
  // Predicated region
  $region2: #{_lambda_.12} parent=0 // pred_check
    _
  $region3: #{_lambda_.12} parent=0 // pred_check_branch
    %10 = sbr.rel (0) target = $region5
  $region4: #{_lambda_.12} parent=0 // pred_region
    _
  $region5: #{_lambda_.12} parent=0 // pred_fallthru
    _
  // Predicated region
  $region6: #{_lambda_.12} parent=0 // pred_check
    _
  $region7: #{_lambda_.12} parent=0 // pred_check_branch
    %12 = sbr.rel (0) target = $region9
  $region8: #{_lambda_.12} parent=0 // pred_region
    _
  $region9: #{_lambda_.12} parent=0 // pred_fallthru
    _
  // Predicated region
  $region10: #{_lambda_.12} parent=0 // pred_check
    _
  $region11: #{_lambda_.12} parent=0 // pred_check_branch
    %14 = sbr.rel (0) target = $region13
  $region12: #{_lambda_.12} parent=0 // pred_region
    _
  $region13: #{_lambda_.12} parent=0 // pred_fallthru
    _
  // Predicated region
  $region14: #{_lambda_.12} parent=0 // pred_check
    _
  $region15: #{_lambda_.12} parent=0 // pred_check_branch
    %16 = sbr.rel (0) target = $region17
  $region16: #{_lambda_.12} parent=0 // pred_region
    _
  $region17: #{_lambda_.12} parent=0 // pred_fallthru
    _
  %v18 = vld [vmem:[%s0] sm:$0xff]
  %v19 = vld [vmem:[%s0 + $0x8] sm:$0xff]
  %v20 = vld [vmem:[%s0 + $0x10] sm:$0xff]
  %v21 = vld [vmem:[%s0 + $0x18] sm:$0xf]
  %v22 = vld [vmem:[%s0 + $0x1c] sm:$0xff]
  %v23 = vld [vmem:[%s0 + $0x24] sm:$0xff]
  %v24 = vld [vmem:[%s0 + $0x2c] sm:$0xff]
  %v25 = vld [vmem:[%s0 + $0x34] sm:$0xf]
  %v26 = vld [vmem:[%s1] sm:$0xf]
  %v27 = vld [vmem:[%s1 + $0x4] sm:$0xf]
  %v28 = vld [vmem:[%s1 + $0x8] sm:$0xf]
  %v29 = vld [vmem:[%s1 + $0xc] sm:$0xf]
  %v30 = vld [vmem:[%s1 + $0x10] sm:$0xf]
  %v31 = vld [vmem:[%s1 + $0x14] sm:$0xf]
  %v32 = vld [vmem:[%s1 + $0x18] sm:$0xf]
  %v33 = vld [vmem:[%s1 + $0x1c] sm:$0xf]
  %v34 = vld [vmem:[%s1 + $0x20] sm:$0xf]
  %v35 = vld [vmem:[%s1 + $0x24] sm:$0xf]
  %v36 = vld [vmem:[%s1 + $0x28] sm:$0xf]
  %v37 = vld [vmem:[%s1 + $0x2c] sm:$0xf]
  %v38 = vld [vmem:[%s1 + $0x30] sm:$0xf]
  %v39 = vld [vmem:[%s1 + $0x34] sm:$0xf]
  %v40 = vld [vmem:[%s1 + $0x38] sm:$0xf]
  %v41 = vld [vmem:[%s1 + $0x3c] sm:$0xf]
  %v42 = vld [vmem:[%s1 + $0x40] sm:$0xf]
  %v43 = vld [vmem:[%s1 + $0x44] sm:$0xf]
  %v44 = vld [vmem:[%s1 + $0x48] sm:$0xf]
  %v45 = vld [vmem:[%s1 + $0x4c] sm:$0xf]
  %v46 = vld [vmem:[%s1 + $0x50] sm:$0xf]
  %v47 = vld [vmem:[%s1 + $0x54] sm:$0xf]
  %v48 = vld [vmem:[%s1 + $0x58] sm:$0xf]
  %v49 = vld [vmem:[%s1 + $0x5c] sm:$0xf]
  %v50 = vld [vmem:[%s1 + $0x60] sm:$0xf]
  %v51 = vld [vmem:[%s1 + $0x64] sm:$0xf]
  %v52 = vld [vmem:[%s1 + $0x68] sm:$0xf]
  %v53 = vld [vmem:[%s1 + $0x6c] sm:$0xf]
  %v54 = vld [vmem:[%s1 + $0x70] sm:$0xf]
  %v55 = vld [vmem:[%s1 + $0x74] sm:$0xf]
  %v56 = vld [vmem:[%s1 + $0x78] sm:$0xf]
  %v57 = vld [vmem:[%s1 + $0x7c] sm:$0xf]
  %v58 = vld [vmem:[%s1 + $0x80] sm:$0xf]
  %v59 = vld [vmem:[%s1 + $0x84] sm:$0xf]
  %v60 = vld [vmem:[%s1 + $0x88] sm:$0xf]
  %v61 = vld [vmem:[%s1 + $0x8c] sm:$0xf]
  %v62 = vld [vmem:[%s1 + $0x90] sm:$0xf]
  %v63 = vld [vmem:[%s1 + $0x94] sm:$0xf]
  %v64 = vld [vmem:[%s1 + $0x98] sm:$0xf]
  %v65 = vld [vmem:[%s1 + $0x9c] sm:$0xf]
  %v66 = vld [vmem:[%s1 + $0xa0] sm:$0xf]
  %v67 = vld [vmem:[%s1 + $0xa4] sm:$0xf]
  %v68 = vld [vmem:[%s1 + $0xa8] sm:$0xf]
  %v69 = vld [vmem:[%s1 + $0xac] sm:$0xf]
  %v70 = vld [vmem:[%s1 + $0xb0] sm:$0xf]
  %v71 = vld [vmem:[%s1 + $0xb4] sm:$0xf]
  %v72 = vld [vmem:[%s1 + $0xb8] sm:$0xf]
  %v73 = vld [vmem:[%s1 + $0xbc] sm:$0xf]
  %v74 = vld [vmem:[%s1 + $0xc0] sm:$0xf]
  %v75 = vld [vmem:[%s1 + $0xc4] sm:$0xf]
  %v76 = vld [vmem:[%s1 + $0xc8] sm:$0xf]
  %v77 = vld [vmem:[%s1 + $0xcc] sm:$0xf]
  %v78 = vld [vmem:[%s1 + $0xd0] sm:$0xf]
  %v79 = vld [vmem:[%s1 + $0xd4] sm:$0xf]
  %v80 = vld [vmem:[%s1 + $0xd8] sm:$0xf]
  %v81 = vld [vmem:[%s1 + $0xdc] sm:$0xf]
  %v82 = vld [vmem:[%s1 + $0xe0] sm:$0xf]
  %v83 = vld [vmem:[%s1 + $0xe4] sm:$0xf]
  %v84 = vld [vmem:[%s1 + $0xe8] sm:$0xf]
  %v85 = vld [vmem:[%s1 + $0xec] sm:$0xf]
  %v86 = vld [vmem:[%s1 + $0xf0] sm:$0xf]
  %v87 = vld [vmem:[%s1 + $0xf4] sm:$0xf]
  %v88 = vld [vmem:[%s1 + $0xf8] sm:$0xf]
  %v89 = vld [vmem:[%s1 + $0xfc] sm:$0xf]
  %v90 = vld [vmem:[%s1 + $0x100] sm:$0xf]
  %v91 = vld [vmem:[%s1 + $0x104] sm:$0xf]
  %v92 = vld [vmem:[%s1 + $0x108] sm:$0xf]
  %v93 = vld [vmem:[%s1 + $0x10c] sm:$0xf]
  %v94 = vld [vmem:[%s1 + $0x110] sm:$0xf]
  %v95 = vld [vmem:[%s1 + $0x114] sm:$0xf]
  %v96 = vld [vmem:[%s1 + $0x118] sm:$0xf]
  %v97 = vld [vmem:[%s1 + $0x11c] sm:$0xf]
  %v98 = vld [vmem:[%s1 + $0x120] sm:$0xf]
  %v99 = vld [vmem:[%s1 + $0x124] sm:$0xf]
  %v100 = vld [vmem:[%s1 + $0x128] sm:$0xf]
  %v101 = vld [vmem:[%s1 + $0x12c] sm:$0xf]
  %v102 = vld [vmem:[%s1 + $0x130] sm:$0xf]
  %v103 = vld [vmem:[%s1 + $0x134] sm:$0xf]
  %v104 = vld [vmem:[%s1 + $0x138] sm:$0xf]
  %v105 = vld [vmem:[%s1 + $0x13c] sm:$0xf]
  %v106 = vld [vmem:[%s1 + $0x140] sm:$0xf]
  %v107 = vld [vmem:[%s1 + $0x144] sm:$0xf]
  %v108 = vld [vmem:[%s1 + $0x148] sm:$0xf]
  %v109 = vld [vmem:[%s1 + $0x14c] sm:$0xf]
  %v110 = vld [vmem:[%s1 + $0x150] sm:$0xf]
  %v111 = vld [vmem:[%s1 + $0x154] sm:$0xf]
  %v112 = vld [vmem:[%s1 + $0x158] sm:$0xf]
  %v113 = vld [vmem:[%s1 + $0x15c] sm:$0xf]
  %v114 = vld [vmem:[%s1 + $0x160] sm:$0xf]
  %v115 = vld [vmem:[%s1 + $0x164] sm:$0xf]
  %v116 = vld [vmem:[%s1 + $0x168] sm:$0xf]
  %v117 = vld [vmem:[%s1 + $0x16c] sm:$0xf]
  %v118 = vld [vmem:[%s1 + $0x170] sm:$0xf]
  %v119 = vld [vmem:[%s1 + $0x174] sm:$0xf]
  %v120 = vld [vmem:[%s1 + $0x178] sm:$0xf]
  %v121 = vld [vmem:[%s1 + $0x17c] sm:$0xf]
  %v122 = vld [vmem:[%s1 + $0x180] sm:$0xf]
  %v123 = vld [vmem:[%s1 + $0x184] sm:$0xf]
  %v124 = vld [vmem:[%s1 + $0x188] sm:$0xf]
  %v125 = vld [vmem:[%s1 + $0x18c] sm:$0xf]
  %v126 = vld [vmem:[%s1 + $0x190] sm:$0xf]
  %v127 = vld [vmem:[%s1 + $0x194] sm:$0xf]
  %v128 = vld [vmem:[%s1 + $0x198] sm:$0xf]
  %v129 = vld [vmem:[%s1 + $0x19c] sm:$0xf]
  %v130 = vld [vmem:[%s1 + $0x1a0] sm:$0xf]
  %v131 = vld [vmem:[%s1 + $0x1a4] sm:$0xf]
  %v132 = vld [vmem:[%s1 + $0x1a8] sm:$0xf]
  %v133 = vld [vmem:[%s1 + $0x1ac] sm:$0xf]
  %v142 = vunpack.c.l.b16 %v18
  %v143 = vunpack.c.h.b16 %v18
  %v144 = vunpack.c.l.b16 %v19
  %v145 = vunpack.c.h.b16 %v19
  %v146 = vunpack.c.l.b16 %v20
  %v147 = vunpack.c.h.b16 %v20
  %v148 = vunpack.c.l.b16 %v21
  %v149 = vunpack.c.l.b16 %v22
  %v150 = vunpack.c.h.b16 %v22
  %v151 = vunpack.c.l.b16 %v23
  %v152 = vunpack.c.h.b16 %v23
  %v153 = vunpack.c.l.b16 %v24
  %v154 = vunpack.c.h.b16 %v24
  %v155 = vunpack.c.l.b16 %v25
  %v156 = vpack.c.b16 %v149, %v142
  %v157 = vpack.c.b16 %v150, %v143
  %v158 = vpack.c.b16 %v151, %v144
  %v159 = vpack.c.b16 %v152, %v145
  %v160 = vpack.c.b16 %v153, %v146
  %v161 = vpack.c.b16 %v154, %v147
  %v162 = vpack.c.b16 %v155, %v148
  %v277 = vunpack.c.l.b16 %v26
  %v278 = vunpack.c.l.b16 %v27
  %v279 = vunpack.c.l.b16 %v28
  %v280 = vunpack.c.l.b16 %v29
  %v281 = vunpack.c.l.b16 %v30
  %v282 = vunpack.c.l.b16 %v31
  %v283 = vunpack.c.l.b16 %v32
  %v284 = vunpack.c.l.b16 %v33
  %v285 = vunpack.c.l.b16 %v34
  %v286 = vunpack.c.l.b16 %v35
  %v287 = vunpack.c.l.b16 %v36
  %v288 = vunpack.c.l.b16 %v37
  %v289 = vunpack.c.l.b16 %v38
  %v290 = vunpack.c.l.b16 %v39
  %v291 = vunpack.c.l.b16 %v40
  %v292 = vunpack.c.l.b16 %v41
  %v293 = vunpack.c.l.b16 %v42
  %v294 = vunpack.c.l.b16 %v43
  %v295 = vunpack.c.l.b16 %v44
  %v296 = vunpack.c.l.b16 %v45
  %v297 = vunpack.c.l.b16 %v46
  %v298 = vunpack.c.l.b16 %v47
  %v299 = vunpack.c.l.b16 %v48
  %v300 = vunpack.c.l.b16 %v49
  %v301 = vunpack.c.l.b16 %v50
  %v302 = vunpack.c.l.b16 %v51
  %v303 = vunpack.c.l.b16 %v52
  %v304 = vunpack.c.l.b16 %v53
  %v305 = vunpack.c.l.b16 %v54
  %v306 = vunpack.c.l.b16 %v55
  %v307 = vunpack.c.l.b16 %v56
  %v308 = vunpack.c.l.b16 %v57
  %v309 = vunpack.c.l.b16 %v58
  %v310 = vunpack.c.l.b16 %v59
  %v311 = vunpack.c.l.b16 %v60
  %v312 = vunpack.c.l.b16 %v61
  %v313 = vunpack.c.l.b16 %v62
  %v314 = vunpack.c.l.b16 %v63
  %v315 = vunpack.c.l.b16 %v64
  %v316 = vunpack.c.l.b16 %v65
  %v317 = vunpack.c.l.b16 %v66
  %v318 = vunpack.c.l.b16 %v67
  %v319 = vunpack.c.l.b16 %v68
  %v320 = vunpack.c.l.b16 %v69
  %v321 = vunpack.c.l.b16 %v70
  %v322 = vunpack.c.l.b16 %v71
  %v323 = vunpack.c.l.b16 %v72
  %v324 = vunpack.c.l.b16 %v73
  %v325 = vunpack.c.l.b16 %v74
  %v326 = vunpack.c.l.b16 %v75
  %v327 = vunpack.c.l.b16 %v76
  %v328 = vunpack.c.l.b16 %v77
  %v329 = vunpack.c.l.b16 %v78
  %v330 = vunpack.c.l.b16 %v79
  %v331 = vunpack.c.l.b16 %v80
  %v332 = vunpack.c.l.b16 %v81
  %v333 = vunpack.c.l.b16 %v82
  %v334 = vunpack.c.l.b16 %v83
  %v335 = vunpack.c.l.b16 %v84
  %v336 = vunpack.c.l.b16 %v85
  %v337 = vunpack.c.l.b16 %v86
  %v338 = vunpack.c.l.b16 %v87
  %v339 = vunpack.c.l.b16 %v88
  %v340 = vunpack.c.l.b16 %v89
  %v341 = vunpack.c.l.b16 %v90
  %v342 = vunpack.c.l.b16 %v91
  %v343 = vunpack.c.l.b16 %v92
  %v344 = vunpack.c.l.b16 %v93
  %v345 = vunpack.c.l.b16 %v94
  %v346 = vunpack.c.l.b16 %v95
  %v347 = vunpack.c.l.b16 %v96
  %v348 = vunpack.c.l.b16 %v97
  %v349 = vunpack.c.l.b16 %v98
  %v350 = vunpack.c.l.b16 %v99
  %v351 = vunpack.c.l.b16 %v100
  %v352 = vunpack.c.l.b16 %v101
  %v353 = vunpack.c.l.b16 %v102
  %v354 = vunpack.c.l.b16 %v103
  %v355 = vunpack.c.l.b16 %v104
  %v356 = vunpack.c.l.b16 %v105
  %v357 = vunpack.c.l.b16 %v106
  %v358 = vunpack.c.l.b16 %v107
  %v359 = vunpack.c.l.b16 %v108
  %v360 = vunpack.c.l.b16 %v109
  %v361 = vunpack.c.l.b16 %v110
  %v362 = vunpack.c.l.b16 %v111
  %v363 = vunpack.c.l.b16 %v112
  %v364 = vunpack.c.l.b16 %v113
  %v365 = vunpack.c.l.b16 %v114
  %v366 = vunpack.c.l.b16 %v115
  %v367 = vunpack.c.l.b16 %v116
  %v368 = vunpack.c.l.b16 %v117
  %v369 = vunpack.c.l.b16 %v118
  %v370 = vunpack.c.l.b16 %v119
  %v371 = vunpack.c.l.b16 %v120
  %v372 = vunpack.c.l.b16 %v121
  %v373 = vunpack.c.l.b16 %v122
  %v374 = vunpack.c.l.b16 %v123
  %v375 = vunpack.c.l.b16 %v124
  %v376 = vunpack.c.l.b16 %v125
  %v377 = vunpack.c.l.b16 %v126
  %v378 = vunpack.c.l.b16 %v127
  %v379 = vunpack.c.l.b16 %v128
  %v380 = vunpack.c.l.b16 %v129
  %v381 = vunpack.c.l.b16 %v130
  %v382 = vunpack.c.l.b16 %v131
  %v383 = vunpack.c.l.b16 %v132
  %v384 = vunpack.c.l.b16 %v133
  %v385 = vpack.c.b16 %v278, %v277
  %v386 = vpack.c.b16 %v280, %v279
  %v387 = vpack.c.b16 %v282, %v281
  %v388 = vpack.c.b16 %v284, %v283
  %v389 = vpack.c.b16 %v286, %v285
  %v390 = vpack.c.b16 %v288, %v287
  %v391 = vpack.c.b16 %v290, %v289
  %v392 = vpack.c.b16 %v292, %v291
  %v393 = vpack.c.b16 %v294, %v293
  %v394 = vpack.c.b16 %v296, %v295
  %v395 = vpack.c.b16 %v298, %v297
  %v396 = vpack.c.b16 %v300, %v299
  %v397 = vpack.c.b16 %v302, %v301
  %v398 = vpack.c.b16 %v304, %v303
  %v399 = vpack.c.b16 %v306, %v305
  %v400 = vpack.c.b16 %v308, %v307
  %v401 = vpack.c.b16 %v310, %v309
  %v402 = vpack.c.b16 %v312, %v311
  %v403 = vpack.c.b16 %v314, %v313
  %v404 = vpack.c.b16 %v316, %v315
  %v405 = vpack.c.b16 %v318, %v317
  %v406 = vpack.c.b16 %v320, %v319
  %v407 = vpack.c.b16 %v322, %v321
  %v408 = vpack.c.b16 %v324, %v323
  %v409 = vpack.c.b16 %v326, %v325
  %v410 = vpack.c.b16 %v328, %v327
  %v411 = vpack.c.b16 %v330, %v329
  %v412 = vpack.c.b16 %v332, %v331
  %v413 = vpack.c.b16 %v334, %v333
  %v414 = vpack.c.b16 %v336, %v335
  %v415 = vpack.c.b16 %v338, %v337
  %v416 = vpack.c.b16 %v340, %v339
  %v417 = vpack.c.b16 %v342, %v341
  %v418 = vpack.c.b16 %v344, %v343
  %v419 = vpack.c.b16 %v346, %v345
  %v420 = vpack.c.b16 %v348, %v347
  %v421 = vpack.c.b16 %v350, %v349
  %v422 = vpack.c.b16 %v352, %v351
  %v423 = vpack.c.b16 %v354, %v353
  %v424 = vpack.c.b16 %v356, %v355
  %v425 = vpack.c.b16 %v358, %v357
  %v426 = vpack.c.b16 %v360, %v359
  %v427 = vpack.c.b16 %v362, %v361
  %v428 = vpack.c.b16 %v364, %v363
  %v429 = vpack.c.b16 %v366, %v365
  %v430 = vpack.c.b16 %v368, %v367
  %v431 = vpack.c.b16 %v370, %v369
  %v432 = vpack.c.b16 %v372, %v371
  %v433 = vpack.c.b16 %v374, %v373
  %v434 = vpack.c.b16 %v376, %v375
  %v435 = vpack.c.b16 %v378, %v377
  %v436 = vpack.c.b16 %v380, %v379
  %v437 = vpack.c.b16 %v382, %v381
  %v438 = vpack.c.b16 %v384, %v383
  %vm493 = vcmask 785408
  %v495 = vsel %vm493, %v162, 0
  %497 = vmatprep.subr.bf16.mxu0 0
  %498 = vmatpush1.bf16.msra.mxu0 %v392
  %499 = vmatprep.subr.bf16.mxu0 0
  %500 = vmatpush1.bf16.msra.mxu0 %v391
  %501 = vmatprep.subr.bf16.mxu0 0
  %502 = vmatpush1.bf16.msra.mxu0 %v390
  %503 = vmatprep.subr.bf16.mxu0 0
  %504 = vmatpush1.bf16.msra.mxu0 %v389
  %505 = vmatprep.subr.bf16.mxu0 0
  %506 = vmatpush1.bf16.msra.mxu0 %v388
  %507 = vmatprep.subr.bf16.mxu0 0
  %508 = vmatpush1.bf16.msra.mxu0 %v387
  %509 = vmatprep.subr.bf16.mxu0 0
  %510 = vmatpush1.bf16.msra.mxu0 %v386
  %511 = vmatprep.subr.bf16.mxu0 0
  %512 = vmatpush1.bf16.msra.mxu0 %v385
  %513 = vmatprep.subr.bf16.mxu0 0
  %514 = vmatpush2.bf16.msra.mxu0 %v400
  %515 = vmatprep.subr.bf16.mxu0 0
  %516 = vmatpush2.bf16.msra.mxu0 %v399
  %517 = vmatprep.subr.bf16.mxu0 0
  %518 = vmatpush2.bf16.msra.mxu0 %v398
  %519 = vmatprep.subr.bf16.mxu0 0
  %520 = vmatpush2.bf16.msra.mxu0 %v397
  %521 = vmatprep.subr.bf16.mxu0 0
  %522 = vmatpush2.bf16.msra.mxu0 %v396
  %523 = vmatprep.subr.bf16.mxu0 0
  %524 = vmatpush2.bf16.msra.mxu0 %v395
  %525 = vmatprep.subr.bf16.mxu0 0
  %526 = vmatpush2.bf16.msra.mxu0 %v394
  %527 = vmatprep.subr.bf16.mxu0 0
  %528 = vmatpush2.bf16.msra.mxu0 %v393
  %529 = vmatprep.mubr.bf16.mxu0 %v157
  %530 = vmatmul.mubr.bf16.gmra.mxu0 %v156
  %v531 = vpop.f32.mrf.mxu0
  %v532 = vadd.f32 0.0, %v531
  %v533 = vpop.f32.mrf.mxu0
  %v534 = vpop.f32.mrf.mxu0
  %v535 = vadd.f32 0.0, %v534
  %v536 = vpop.f32.mrf.mxu0
  %537 = vdwg.mxu0
  %538 = vmatprep.subr.bf16.mxu0 0
  %539 = vmatpush1.bf16.msra.mxu0 %v408
  %540 = vmatprep.subr.bf16.mxu0 0
  %541 = vmatpush1.bf16.msra.mxu0 %v407
  %542 = vmatprep.subr.bf16.mxu0 0
  %543 = vmatpush1.bf16.msra.mxu0 %v406
  %544 = vmatprep.subr.bf16.mxu0 0
  %545 = vmatpush1.bf16.msra.mxu0 %v405
  %546 = vmatprep.subr.bf16.mxu0 0
  %547 = vmatpush1.bf16.msra.mxu0 %v404
  %548 = vmatprep.subr.bf16.mxu0 0
  %549 = vmatpush1.bf16.msra.mxu0 %v403
  %550 = vmatprep.subr.bf16.mxu0 0
  %551 = vmatpush1.bf16.msra.mxu0 %v402
  %552 = vmatprep.subr.bf16.mxu0 0
  %553 = vmatpush1.bf16.msra.mxu0 %v401
  %554 = vmatprep.subr.bf16.mxu0 0
  %555 = vmatpush2.bf16.msra.mxu0 %v416
  %556 = vmatprep.subr.bf16.mxu0 0
  %557 = vmatpush2.bf16.msra.mxu0 %v415
  %558 = vmatprep.subr.bf16.mxu0 0
  %559 = vmatpush2.bf16.msra.mxu0 %v414
  %560 = vmatprep.subr.bf16.mxu0 0
  %561 = vmatpush2.bf16.msra.mxu0 %v413
  %562 = vmatprep.subr.bf16.mxu0 0
  %563 = vmatpush2.bf16.msra.mxu0 %v412
  %564 = vmatprep.subr.bf16.mxu0 0
  %565 = vmatpush2.bf16.msra.mxu0 %v411
  %566 = vmatprep.subr.bf16.mxu0 0
  %567 = vmatpush2.bf16.msra.mxu0 %v410
  %568 = vmatprep.subr.bf16.mxu0 0
  %569 = vmatpush2.bf16.msra.mxu0 %v409
  %570 = vmatprep.mubr.bf16.mxu0 %v159
  %571 = vmatmul.mubr.bf16.gmra.mxu0 %v158
  %v572 = vpop.f32.mrf.mxu0
  %v573 = vadd.f32 %v532, %v572
  %v574 = vpop.f32.mrf.mxu0
  %v575 = vpop.f32.mrf.mxu0
  %v576 = vadd.f32 %v535, %v575
  %v577 = vpop.f32.mrf.mxu0
  %578 = vdwg.mxu0
  %579 = vmatprep.subr.bf16.mxu0 0
  %580 = vmatpush1.bf16.msra.mxu0 %v424
  %581 = vmatprep.subr.bf16.mxu0 0
  %582 = vmatpush1.bf16.msra.mxu0 %v423
  %583 = vmatprep.subr.bf16.mxu0 0
  %584 = vmatpush1.bf16.msra.mxu0 %v422
  %585 = vmatprep.subr.bf16.mxu0 0
  %586 = vmatpush1.bf16.msra.mxu0 %v421
  %587 = vmatprep.subr.bf16.mxu0 0
  %588 = vmatpush1.bf16.msra.mxu0 %v420
  %589 = vmatprep.subr.bf16.mxu0 0
  %590 = vmatpush1.bf16.msra.mxu0 %v419
  %591 = vmatprep.subr.bf16.mxu0 0
  %592 = vmatpush1.bf16.msra.mxu0 %v418
  %593 = vmatprep.subr.bf16.mxu0 0
  %594 = vmatpush1.bf16.msra.mxu0 %v417
  %595 = vmatprep.subr.bf16.mxu0 0
  %596 = vmatpush2.bf16.msra.mxu0 %v432
  %597 = vmatprep.subr.bf16.mxu0 0
  %598 = vmatpush2.bf16.msra.mxu0 %v431
  %599 = vmatprep.subr.bf16.mxu0 0
  %600 = vmatpush2.bf16.msra.mxu0 %v430
  %601 = vmatprep.subr.bf16.mxu0 0
  %602 = vmatpush2.bf16.msra.mxu0 %v429
  %603 = vmatprep.subr.bf16.mxu0 0
  %604 = vmatpush2.bf16.msra.mxu0 %v428
  %605 = vmatprep.subr.bf16.mxu0 0
  %606 = vmatpush2.bf16.msra.mxu0 %v427
  %607 = vmatprep.subr.bf16.mxu0 0
  %608 = vmatpush2.bf16.msra.mxu0 %v426
  %609 = vmatprep.subr.bf16.mxu0 0
  %610 = vmatpush2.bf16.msra.mxu0 %v425
  %611 = vmatprep.mubr.bf16.mxu0 %v161
  %612 = vmatmul.mubr.bf16.gmra.mxu0 %v160
  %v613 = vpop.f32.mrf.mxu0
  %v614 = vadd.f32 %v573, %v613
  %v615 = vpop.f32.mrf.mxu0
  %v616 = vpop.f32.mrf.mxu0
  %v617 = vadd.f32 %v576, %v616
  %v618 = vpop.f32.mrf.mxu0
  %619 = vdwg.mxu0
  %620 = vmatprep.subr.bf16.mxu0 0
  %621 = vmatpush1.bf16.msra.mxu0 0
  %622 = vmatprep.subr.bf16.mxu0 0
  %623 = vmatpush1.bf16.msra.mxu0 0
  %624 = vmatprep.subr.bf16.mxu0 0
  %625 = vmatpush1.bf16.msra.mxu0 %v438
  %626 = vmatprep.subr.bf16.mxu0 0
  %627 = vmatpush1.bf16.msra.mxu0 %v437
  %628 = vmatprep.subr.bf16.mxu0 0
  %629 = vmatpush1.bf16.msra.mxu0 %v436
  %630 = vmatprep.subr.bf16.mxu0 0
  %631 = vmatpush1.bf16.msra.mxu0 %v435
  %632 = vmatprep.subr.bf16.mxu0 0
  %633 = vmatpush1.bf16.msra.mxu0 %v434
  %634 = vmatprep.subr.bf16.mxu0 0
  %635 = vmatpush1.bf16.msra.mxu0 %v433
  %636 = vmatprep.subr.bf16.mxu0 0
  %637 = vmatpush2.bf16.msra.mxu0 0
  %638 = vmatprep.subr.bf16.mxu0 0
  %639 = vmatpush2.bf16.msra.mxu0 0
  %640 = vmatprep.subr.bf16.mxu0 0
  %641 = vmatpush2.bf16.msra.mxu0 0
  %642 = vmatprep.subr.bf16.mxu0 0
  %643 = vmatpush2.bf16.msra.mxu0 0
  %644 = vmatprep.subr.bf16.mxu0 0
  %645 = vmatpush2.bf16.msra.mxu0 0
  %646 = vmatprep.subr.bf16.mxu0 0
  %647 = vmatpush2.bf16.msra.mxu0 0
  %648 = vmatprep.subr.bf16.mxu0 0
  %649 = vmatpush2.bf16.msra.mxu0 0
  %650 = vmatprep.subr.bf16.mxu0 0
  %651 = vmatpush2.bf16.msra.mxu0 0
  %652 = vmatprep.mubr.bf16.mxu0 0
  %653 = vmatmul.mubr.bf16.gmra.mxu0 %v495
  %v654 = vpop.f32.mrf.mxu0
  %v655 = vadd.f32 %v614, %v654
  %v656 = vpop.f32.mrf.mxu0
  %v657 = vpop.f32.mrf.mxu0
  %v658 = vadd.f32 %v617, %v657
  %v659 = vpop.f32.mrf.mxu0
  %660 = vdwg.mxu0
  %v661 = vld [vmem:[%s2] sm:$0x1]
  %v663 = vlaneseq
  %v664 = vshrl.u32 %v663, 7
  %v665 = vsub.s32 0, %v664
  %v666 = vrot.slane %v661, %v665
  %v668 = vmul.f32 %v655, %v666
  %v669 = vmul.f32 %v658, %v666
  %v670 = vld [vmem:[%s3] sm:$0x1]
  %v672 = vlaneseq
  %v673 = vshrl.u32 %v672, 7
  %v674 = vsub.s32 0, %v673
  %v675 = vrot.slane %v670, %v674
  %v677 = vadd.f32 %v668, %v675
  %v678 = vadd.f32 %v669, %v675
  %v679 = vmax.f32 %v677, 0.0
  %v680 = vmax.f32 %v678, 0.0
  %681 = vst [vmem:[%s4] sm:$0xff] %v679
  %682 = vst [vmem:[%s4 + $0x8] sm:$0xff] %v680
  // Predicated region
  $region18: #{_lambda_.12} parent=0 // pred_check
    _
  $region19: #{_lambda_.12} parent=0 // pred_check_branch
    %684 = sbr.rel (0) target = $region21
  $region20: #{_lambda_.12} parent=0 // pred_region
    _
  $region21: #{_lambda_.12} parent=0 // pred_fallthru
    _
  // Predicated region
  $region22: #{_lambda_.12} parent=0 // pred_check
    _
  $region23: #{_lambda_.12} parent=0 // pred_check_branch
    %686 = sbr.rel (0) target = $region25
  $region24: #{_lambda_.12} parent=0 // pred_region
    _
  $region25: #{_lambda_.12} parent=0 // pred_fallthru
    _

// kernel: _lambda_.13
$region0: #{_lambda_.13}
  #allocation0 [shape = 'u32[]', space=smem, size = 0x4, offset = 0x4, fixed_abs, tag = 'smem constant byte address 0x4 - core index']
  #allocation1 [shape = 'u32[144,128]{1,0:T(1,128)}', space=vmem, size = 0x12000, scoped, tag = 'internal scratch']
  %s0 = inlined_call_operand.vmem [shape: bf16[16,256], index: 0, kind: input, shape index: {}]
  %s1 = inlined_call_operand.vmem [shape: bf16[256,128], index: 1, kind: input, shape index: {}]
  %s2 = inlined_call_operand.vmem [shape: f32[1,128], index: 2, kind: input, shape index: {}]
  %s3 = inlined_call_operand.vmem [shape: bf16[128,128], index: 3, kind: input, shape index: {}]
  %s4 = inlined_call_operand.vmem [shape: f32[1,128], index: 4, kind: input, shape index: {}]
  %s5 = inlined_call_operand.vmem [shape: bf16[128,128], index: 5, kind: input, shape index: {}]
  %s6 = inlined_call_operand.vmem [shape: f32[1,128], index: 6, kind: input, shape index: {}]
  %s7 = inlined_call_operand.vmem [shape: f32[16,128], index: 7, kind: output, shape index: {}]
  %s8 = sld [smem:[#allocation0]]
  $region38: #{_lambda_.13} parent=0
    _
  %s10 = ssub.s32 1, %s8
  %s11 = scalar_select 0, %s10, %s8
  // Predicated region
  $region2: #{_lambda_.13} parent=0 // pred_check
    _
  $region3: #{_lambda_.13} parent=0 // pred_check_branch
    %13 = sbr.rel (0) target = $region5
  $region4: #{_lambda_.13} parent=0 // pred_region
    _
  $region5: #{_lambda_.13} parent=0 // pred_fallthru
    _
  // Predicated region
  $region6: #{_lambda_.13} parent=0 // pred_check
    _
  $region7: #{_lambda_.13} parent=0 // pred_check_branch
    %15 = sbr.rel (0) target = $region9
  $region8: #{_lambda_.13} parent=0 // pred_region
    _
  $region9: #{_lambda_.13} parent=0 // pred_fallthru
    _
  // Predicated region
  $region10: #{_lambda_.13} parent=0 // pred_check
    _
  $region11: #{_lambda_.13} parent=0 // pred_check_branch
    %17 = sbr.rel (0) target = $region13
  $region12: #{_lambda_.13} parent=0 // pred_region
    _
  $region13: #{_lambda_.13} parent=0 // pred_fallthru
    _
  // Predicated region
  $region14: #{_lambda_.13} parent=0 // pred_check
    _
  $region15: #{_lambda_.13} parent=0 // pred_check_branch
    %19 = sbr.rel (0) target = $region17
  $region16: #{_lambda_.13} parent=0 // pred_region
    _
  $region17: #{_lambda_.13} parent=0 // pred_fallthru
    _
  // Predicated region
  $region18: #{_lambda_.13} parent=0 // pred_check
    _
  $region19: #{_lambda_.13} parent=0 // pred_check_branch
    %21 = sbr.rel (0) target = $region21
  $region20: #{_lambda_.13} parent=0 // pred_region
    _
  $region21: #{_lambda_.13} parent=0 // pred_fallthru
    _
  // Predicated region
  $region22: #{_lambda_.13} parent=0 // pred_check
    _
  $region23: #{_lambda_.13} parent=0 // pred_check_branch
    %23 = sbr.rel (0) target = $region25
  $region24: #{_lambda_.13} parent=0 // pred_region
    _
  $region25: #{_lambda_.13} parent=0 // pred_fallthru
    _
  // Predicated region
  $region26: #{_lambda_.13} parent=0 // pred_check
    _
  $region27: #{_lambda_.13} parent=0 // pred_check_branch
    %25 = sbr.rel (0) target = $region29
  $region28: #{_lambda_.13} parent=0 // pred_region
    _
  $region29: #{_lambda_.13} parent=0 // pred_fallthru
    _
  %v27 = vld [vmem:[%s0] sm:$0xff]
  %v28 = vld [vmem:[%s0 + $0x8] sm:$0xff]
  %v29 = vld [vmem:[%s1] sm:$0xf]
  %v30 = vld [vmem:[%s1 + $0x4] sm:$0xf]
  %v31 = vld [vmem:[%s1 + $0x8] sm:$0xf]
  %v32 = vld [vmem:[%s1 + $0xc] sm:$0xf]
  %v33 = vld [vmem:[%s1 + $0x10] sm:$0xf]
  %v34 = vld [vmem:[%s1 + $0x14] sm:$0xf]
  %v35 = vld [vmem:[%s1 + $0x18] sm:$0xf]
  %v36 = vld [vmem:[%s1 + $0x1c] sm:$0xf]
  %v37 = vld [vmem:[%s1 + $0x20] sm:$0xf]
  %v38 = vld [vmem:[%s1 + $0x24] sm:$0xf]
  %v39 = vld [vmem:[%s1 + $0x28] sm:$0xf]
  %v40 = vld [vmem:[%s1 + $0x2c] sm:$0xf]
  %v41 = vld [vmem:[%s1 + $0x30] sm:$0xf]
  %v42 = vld [vmem:[%s1 + $0x34] sm:$0xf]
  %v43 = vld [vmem:[%s1 + $0x38] sm:$0xf]
  %v44 = vld [vmem:[%s1 + $0x3c] sm:$0xf]
  %v45 = vld [vmem:[%s1 + $0x40] sm:$0xf]
  %v46 = vld [vmem:[%s1 + $0x44] sm:$0xf]
  %v47 = vld [vmem:[%s1 + $0x48] sm:$0xf]
  %v48 = vld [vmem:[%s1 + $0x4c] sm:$0xf]
  %v49 = vld [vmem:[%s1 + $0x50] sm:$0xf]
  %v50 = vld [vmem:[%s1 + $0x54] sm:$0xf]
  %v51 = vld [vmem:[%s1 + $0x58] sm:$0xf]
  %v52 = vld [vmem:[%s1 + $0x5c] sm:$0xf]
  %v53 = vld [vmem:[%s1 + $0x60] sm:$0xf]
  %v54 = vld [vmem:[%s1 + $0x64] sm:$0xf]
  %v55 = vld [vmem:[%s1 + $0x68] sm:$0xf]
  %v56 = vld [vmem:[%s1 + $0x6c] sm:$0xf]
  %v57 = vld [vmem:[%s1 + $0x70] sm:$0xf]
  %v58 = vld [vmem:[%s1 + $0x74] sm:$0xf]
  %v59 = vld [vmem:[%s1 + $0x78] sm:$0xf]
  %v60 = vld [vmem:[%s1 + $0x7c] sm:$0xf]
  %v61 = vld [vmem:[%s2] sm:$0x1]
  %v63 = vlaneseq
  %v64 = vshrl.u32 %v63, 7
  %v65 = vsub.s32 0, %v64
  %v66 = vrot.slane %v61, %v65
  %v70 = vunpack.c.l.b16 %v27
  %v71 = vunpack.c.h.b16 %v27
  %v72 = vunpack.c.l.b16 %v28
  %v73 = vunpack.c.h.b16 %v28
  %v74 = vpack.c.b16 %v72, %v70
  %v75 = vpack.c.b16 %v73, %v71
  %v110 = vunpack.c.l.b16 %v29
  %v111 = vunpack.c.l.b16 %v30
  %v112 = vunpack.c.l.b16 %v31
  %v113 = vunpack.c.l.b16 %v32
  %v114 = vunpack.c.l.b16 %v33
  %v115 = vunpack.c.l.b16 %v34
  %v116 = vunpack.c.l.b16 %v35
  %v117 = vunpack.c.l.b16 %v36
  %v118 = vunpack.c.l.b16 %v37
  %v119 = vunpack.c.l.b16 %v38
  %v120 = vunpack.c.l.b16 %v39
  %v121 = vunpack.c.l.b16 %v40
  %v122 = vunpack.c.l.b16 %v41
  %v123 = vunpack.c.l.b16 %v42
  %v124 = vunpack.c.l.b16 %v43
  %v125 = vunpack.c.l.b16 %v44
  %v126 = vunpack.c.l.b16 %v45
  %v127 = vunpack.c.l.b16 %v46
  %v128 = vunpack.c.l.b16 %v47
  %v129 = vunpack.c.l.b16 %v48
  %v130 = vunpack.c.l.b16 %v49
  %v131 = vunpack.c.l.b16 %v50
  %v132 = vunpack.c.l.b16 %v51
  %v133 = vunpack.c.l.b16 %v52
  %v134 = vunpack.c.l.b16 %v53
  %v135 = vunpack.c.l.b16 %v54
  %v136 = vunpack.c.l.b16 %v55
  %v137 = vunpack.c.l.b16 %v56
  %v138 = vunpack.c.l.b16 %v57
  %v139 = vunpack.c.l.b16 %v58
  %v140 = vunpack.c.l.b16 %v59
  %v141 = vunpack.c.l.b16 %v60
  %v142 = vpack.c.b16 %v111, %v110
  %v143 = vpack.c.b16 %v113, %v112
  %v144 = vpack.c.b16 %v115, %v114
  %v145 = vpack.c.b16 %v117, %v116
  %v146 = vpack.c.b16 %v119, %v118
  %v147 = vpack.c.b16 %v121, %v120
  %v148 = vpack.c.b16 %v123, %v122
  %v149 = vpack.c.b16 %v125, %v124
  %v150 = vpack.c.b16 %v127, %v126
  %v151 = vpack.c.b16 %v129, %v128
  %v152 = vpack.c.b16 %v131, %v130
  %v153 = vpack.c.b16 %v133, %v132
  %v154 = vpack.c.b16 %v135, %v134
  %v155 = vpack.c.b16 %v137, %v136
  %v156 = vpack.c.b16 %v139, %v138
  %v157 = vpack.c.b16 %v141, %v140
  %174 = vmatprep.subr.bf16.mxu0 0
  %175 = vmatpush1.bf16.msra.mxu0 %v149
  %176 = vmatprep.subr.bf16.mxu0 0
  %177 = vmatpush1.bf16.msra.mxu0 %v148
  %178 = vmatprep.subr.bf16.mxu0 0
  %179 = vmatpush1.bf16.msra.mxu0 %v147
  %180 = vmatprep.subr.bf16.mxu0 0
  %181 = vmatpush1.bf16.msra.mxu0 %v146
  %182 = vmatprep.subr.bf16.mxu0 0
  %183 = vmatpush1.bf16.msra.mxu0 %v145
  %184 = vmatprep.subr.bf16.mxu0 0
  %185 = vmatpush1.bf16.msra.mxu0 %v144
  %186 = vmatprep.subr.bf16.mxu0 0
  %187 = vmatpush1.bf16.msra.mxu0 %v143
  %188 = vmatprep.subr.bf16.mxu0 0
  %189 = vmatpush1.bf16.msra.mxu0 %v142
  %190 = vmatprep.subr.bf16.mxu0 0
  %191 = vmatpush2.bf16.msra.mxu0 %v157
  %192 = vmatprep.subr.bf16.mxu0 0
  %193 = vmatpush2.bf16.msra.mxu0 %v156
  %194 = vmatprep.subr.bf16.mxu0 0
  %195 = vmatpush2.bf16.msra.mxu0 %v155
  %196 = vmatprep.subr.bf16.mxu0 0
  %197 = vmatpush2.bf16.msra.mxu0 %v154
  %198 = vmatprep.subr.bf16.mxu0 0
  %199 = vmatpush2.bf16.msra.mxu0 %v153
  %200 = vmatprep.subr.bf16.mxu0 0
  %201 = vmatpush2.bf16.msra.mxu0 %v152
  %202 = vmatprep.subr.bf16.mxu0 0
  %203 = vmatpush2.bf16.msra.mxu0 %v151
  %204 = vmatprep.subr.bf16.mxu0 0
  %205 = vmatpush2.bf16.msra.mxu0 %v150
  %206 = vmatprep.mubr.bf16.mxu0 %v75
  %207 = vmatmul.mubr.bf16.gmra.mxu0 %v74
  %v208 = vpop.f32.mrf.mxu0
  %v209 = vadd.f32 %v66, %v208
  %v210 = vpop.f32.mrf.mxu0
  %v211 = vpop.f32.mrf.mxu0
  %v212 = vadd.f32 %v66, %v211
  %v213 = vpop.f32.mrf.mxu0
  %214 = vdwg.mxu0
  %v215 = vmax.f32 %v209, 0.0
  %v216 = vmax.f32 %v212, 0.0
  %v217 = vpack.c.bf16 %v216, %v215
  %v218 = vld [vmem:[%s3] sm:$0xf]
  %v219 = vld [vmem:[%s3 + $0x4] sm:$0xf]
  %v220 = vld [vmem:[%s3 + $0x8] sm:$0xf]
  %v221 = vld [vmem:[%s3 + $0xc] sm:$0xf]
  %v222 = vld [vmem:[%s3 + $0x10] sm:$0xf]
  %v223 = vld [vmem:[%s3 + $0x14] sm:$0xf]
  %v224 = vld [vmem:[%s3 + $0x18] sm:$0xf]
  %v225 = vld [vmem:[%s3 + $0x1c] sm:$0xf]
  %v226 = vld [vmem:[%s3 + $0x20] sm:$0xf]
  %v227 = vld [vmem:[%s3 + $0x24] sm:$0xf]
  %v228 = vld [vmem:[%s3 + $0x28] sm:$0xf]
  %v229 = vld [vmem:[%s3 + $0x2c] sm:$0xf]
  %v230 = vld [vmem:[%s3 + $0x30] sm:$0xf]
  %v231 = vld [vmem:[%s3 + $0x34] sm:$0xf]
  %v232 = vld [vmem:[%s3 + $0x38] sm:$0xf]
  %v233 = vld [vmem:[%s3 + $0x3c] sm:$0xf]
  %v234 = vld [vmem:[%s4] sm:$0x1]
  %v236 = vlaneseq
  %v237 = vshrl.u32 %v236, 7
  %v238 = vsub.s32 0, %v237
  %v239 = vrot.slane %v234, %v238
  %v257 = vunpack.c.l.b16 %v218
  %v258 = vunpack.c.l.b16 %v219
  %v259 = vunpack.c.l.b16 %v220
  %v260 = vunpack.c.l.b16 %v221
  %v261 = vunpack.c.l.b16 %v222
  %v262 = vunpack.c.l.b16 %v223
  %v263 = vunpack.c.l.b16 %v224
  %v264 = vunpack.c.l.b16 %v225
  %v265 = vunpack.c.l.b16 %v226
  %v266 = vunpack.c.l.b16 %v227
  %v267 = vunpack.c.l.b16 %v228
  %v268 = vunpack.c.l.b16 %v229
  %v269 = vunpack.c.l.b16 %v230
  %v270 = vunpack.c.l.b16 %v231
  %v271 = vunpack.c.l.b16 %v232
  %v272 = vunpack.c.l.b16 %v233
  %v273 = vpack.c.b16 %v258, %v257
  %v274 = vpack.c.b16 %v260, %v259
  %v275 = vpack.c.b16 %v262, %v261
  %v276 = vpack.c.b16 %v264, %v263
  %v277 = vpack.c.b16 %v266, %v265
  %v278 = vpack.c.b16 %v268, %v267
  %v279 = vpack.c.b16 %v270, %v269
  %v280 = vpack.c.b16 %v272, %v271
  %289 = vmatprep.subr.bf16.mxu0 0
  %290 = vmatpush1.bf16.msra.mxu0 %v280
  %291 = vmatprep.subr.bf16.mxu0 0
  %292 = vmatpush1.bf16.msra.mxu0 %v279
  %293 = vmatprep.subr.bf16.mxu0 0
  %294 = vmatpush1.bf16.msra.mxu0 %v278
  %295 = vmatprep.subr.bf16.mxu0 0
  %296 = vmatpush1.bf16.msra.mxu0 %v277
  %297 = vmatprep.subr.bf16.mxu0 0
  %298 = vmatpush1.bf16.msra.mxu0 %v276
  %299 = vmatprep.subr.bf16.mxu0 0
  %300 = vmatpush1.bf16.msra.mxu0 %v275
  %301 = vmatprep.subr.bf16.mxu0 0
  %302 = vmatpush1.bf16.msra.mxu0 %v274
  %303 = vmatprep.subr.bf16.mxu0 0
  %304 = vmatpush1.bf16.msra.mxu0 %v273
  %305 = vmatprep.subr.bf16.mxu0 0
  %306 = vmatpush2.bf16.msra.mxu0 0
  %307 = vmatprep.subr.bf16.mxu0 0
  %308 = vmatpush2.bf16.msra.mxu0 0
  %309 = vmatprep.subr.bf16.mxu0 0
  %310 = vmatpush2.bf16.msra.mxu0 0
  %311 = vmatprep.subr.bf16.mxu0 0
  %312 = vmatpush2.bf16.msra.mxu0 0
  %313 = vmatprep.subr.bf16.mxu0 0
  %314 = vmatpush2.bf16.msra.mxu0 0
  %315 = vmatprep.subr.bf16.mxu0 0
  %316 = vmatpush2.bf16.msra.mxu0 0
  %317 = vmatprep.subr.bf16.mxu0 0
  %318 = vmatpush2.bf16.msra.mxu0 0
  %319 = vmatprep.subr.bf16.mxu0 0
  %320 = vmatpush2.bf16.msra.mxu0 0
  %321 = vmatprep.mubr.bf16.mxu0 0
  %322 = vmatmul.mubr.bf16.gmra.mxu0 %v217
  %v323 = vpop.f32.mrf.mxu0
  %v324 = vadd.f32 %v239, %v323
  %v325 = vpop.f32.mrf.mxu0
  %v326 = vpop.f32.mrf.mxu0
  %v327 = vadd.f32 %v239, %v326
  %v328 = vpop.f32.mrf.mxu0
  %329 = vdwg.mxu0
  %v330 = vmax.f32 %v324, 0.0
  %v331 = vmax.f32 %v327, 0.0
  %v332 = vpack.c.bf16 %v331, %v330
  %v333 = vld [vmem:[%s5] sm:$0xf]
  %v334 = vld [vmem:[%s5 + $0x4] sm:$0xf]
  %v335 = vld [vmem:[%s5 + $0x8] sm:$0xf]
  %v336 = vld [vmem:[%s5 + $0xc] sm:$0xf]
  %v337 = vld [vmem:[%s5 + $0x10] sm:$0xf]
  %v338 = vld [vmem:[%s5 + $0x14] sm:$0xf]
  %v339 = vld [vmem:[%s5 + $0x18] sm:$0xf]
  %v340 = vld [vmem:[%s5 + $0x1c] sm:$0xf]
  %v341 = vld [vmem:[%s5 + $0x20] sm:$0xf]
  %v342 = vld [vmem:[%s5 + $0x24] sm:$0xf]
  %v343 = vld [vmem:[%s5 + $0x28] sm:$0xf]
  %v344 = vld [vmem:[%s5 + $0x2c] sm:$0xf]
  %v345 = vld [vmem:[%s5 + $0x30] sm:$0xf]
  %v346 = vld [vmem:[%s5 + $0x34] sm:$0xf]
  %v347 = vld [vmem:[%s5 + $0x38] sm:$0xf]
  %v348 = vld [vmem:[%s5 + $0x3c] sm:$0xf]
  %v349 = vld [vmem:[%s6] sm:$0x1]
  %v351 = vlaneseq
  %v352 = vshrl.u32 %v351, 7
  %v353 = vsub.s32 0, %v352
  %v354 = vrot.slane %v349, %v353
  %v372 = vunpack.c.l.b16 %v333
  %v373 = vunpack.c.l.b16 %v334
  %v374 = vunpack.c.l.b16 %v335
  %v375 = vunpack.c.l.b16 %v336
  %v376 = vunpack.c.l.b16 %v337
  %v377 = vunpack.c.l.b16 %v338
  %v378 = vunpack.c.l.b16 %v339
  %v379 = vunpack.c.l.b16 %v340
  %v380 = vunpack.c.l.b16 %v341
  %v381 = vunpack.c.l.b16 %v342
  %v382 = vunpack.c.l.b16 %v343
  %v383 = vunpack.c.l.b16 %v344
  %v384 = vunpack.c.l.b16 %v345
  %v385 = vunpack.c.l.b16 %v346
  %v386 = vunpack.c.l.b16 %v347
  %v387 = vunpack.c.l.b16 %v348
  %v388 = vpack.c.b16 %v373, %v372
  %v389 = vpack.c.b16 %v375, %v374
  %v390 = vpack.c.b16 %v377, %v376
  %v391 = vpack.c.b16 %v379, %v378
  %v392 = vpack.c.b16 %v381, %v380
  %v393 = vpack.c.b16 %v383, %v382
  %v394 = vpack.c.b16 %v385, %v384
  %v395 = vpack.c.b16 %v387, %v386
  %404 = vmatprep.subr.bf16.mxu0 0
  %405 = vmatpush1.bf16.msra.mxu0 %v395
  %406 = vmatprep.subr.bf16.mxu0 0
  %407 = vmatpush1.bf16.msra.mxu0 %v394
  %408 = vmatprep.subr.bf16.mxu0 0
  %409 = vmatpush1.bf16.msra.mxu0 %v393
  %410 = vmatprep.subr.bf16.mxu0 0
  %411 = vmatpush1.bf16.msra.mxu0 %v392
  %412 = vmatprep.subr.bf16.mxu0 0
  %413 = vmatpush1.bf16.msra.mxu0 %v391
  %414 = vmatprep.subr.bf16.mxu0 0
  %415 = vmatpush1.bf16.msra.mxu0 %v390
  %416 = vmatprep.subr.bf16.mxu0 0
  %417 = vmatpush1.bf16.msra.mxu0 %v389
  %418 = vmatprep.subr.bf16.mxu0 0
  %419 = vmatpush1.bf16.msra.mxu0 %v388
  %420 = vmatprep.subr.bf16.mxu0 0
  %421 = vmatpush2.bf16.msra.mxu0 0
  %422 = vmatprep.subr.bf16.mxu0 0
  %423 = vmatpush2.bf16.msra.mxu0 0
  %424 = vmatprep.subr.bf16.mxu0 0
  %425 = vmatpush2.bf16.msra.mxu0 0
  %426 = vmatprep.subr.bf16.mxu0 0
  %427 = vmatpush2.bf16.msra.mxu0 0
  %428 = vmatprep.subr.bf16.mxu0 0
  %429 = vmatpush2.bf16.msra.mxu0 0
  %430 = vmatprep.subr.bf16.mxu0 0
  %431 = vmatpush2.bf16.msra.mxu0 0
  %432 = vmatprep.subr.bf16.mxu0 0
  %433 = vmatpush2.bf16.msra.mxu0 0
  %434 = vmatprep.subr.bf16.mxu0 0
  %435 = vmatpush2.bf16.msra.mxu0 0
  %436 = vmatprep.mubr.bf16.mxu0 0
  %437 = vmatmul.mubr.bf16.gmra.mxu0 %v332
  %v438 = vpop.f32.mrf.mxu0
  %v439 = vadd.f32 %v354, %v438
  %v440 = vpop.f32.mrf.mxu0
  %v441 = vpop.f32.mrf.mxu0
  %v442 = vadd.f32 %v354, %v441
  %v443 = vpop.f32.mrf.mxu0
  %444 = vdwg.mxu0
  %445 = vst [vmem:[%s7] sm:$0xff] %v439
  %446 = vst [vmem:[%s7 + $0x8] sm:$0xff] %v442
  // Predicated region
  $region30: #{_lambda_.13} parent=0 // pred_check
    _
  $region31: #{_lambda_.13} parent=0 // pred_check_branch
    %448 = sbr.rel (0) target = $region33
  $region32: #{_lambda_.13} parent=0 // pred_region
    _
  $region33: #{_lambda_.13} parent=0 // pred_fallthru
    _
  // Predicated region
  $region34: #{_lambda_.13} parent=0 // pred_check
    _
  $region35: #{_lambda_.13} parent=0 // pred_check_branch
    %450 = sbr.rel (0) target = $region37
  $region36: #{_lambda_.13} parent=0 // pred_region
    _
  $region37: #{_lambda_.13} parent=0 // pred_fallthru
    _

</llo_original>
